<compile_context>
chip_gen: v7x
topology: tpu7x:2x2x1
jax: 0.10.0
libtpu: 0.0.40
codegen_flags: <defaults>
</compile_context>

<pallas_src>
import jax
import jax.numpy as jnp
from jax import lax
from jax.experimental import pallas as pl
from jax.experimental.pallas import tpu as pltpu


def _dense_layer_kernel(scale_ref, shift_ref, w_ref, b_ref, x_ref, out_ref):
    """One batch element per grid step.

    scale_ref, shift_ref : (1, Cin)            folded BN scale / shift
    w_ref                : (9*Cin, Cout)       folded 3x3 conv weights
    b_ref                : (Cout, 1)           conv bias (column vector)
    x_ref                : (1, H+2, W+2, Cin)  zero-padded NHWC input block
    out_ref              : (1, Cout, H*W)      channel-major, lane-dense output
    """
    xp = x_ref[0]                       # (H+2, W+2, Cin)
    hp, wp, cin = xp.shape
    h, w = hp - 2, wp - 2

    # --- BatchNorm (inference) + ReLU, fused in VMEM (f32 math) -------------
    a = xp.astype(jnp.float32) * scale_ref[...].astype(jnp.float32) \
        + shift_ref[...].astype(jnp.float32)
    a = jnp.maximum(a, 0.0)

    # The conv's zero padding lives OUTSIDE BN+ReLU: re-zero the 1-px border
    # (BN shift + ReLU would otherwise leak a nonzero constant into the halo).
    row = lax.broadcasted_iota(jnp.int32, (hp, wp, 1), 0)
    col = lax.broadcasted_iota(jnp.int32, (hp, wp, 1), 1)
    interior = (row >= 1) & (row <= h) & (col >= 1) & (col <= w)
    a = jnp.where(interior, a, 0.0).astype(w_ref.dtype)

    # --- Folded im2col built in VMEM (never touches HBM) --------------------
    # patches: (H*W, 9*Cin); column order (kh, kw, c) matches w_ref rows.
    taps = [a[kh:kh + h, kw:kw + w, :].reshape(h * w, cin)
            for kh in range(3) for kw in range(3)]
    patches = jnp.concatenate(taps, axis=-1)

    # --- Single MXU contraction of depth 9*Cin, f32 accumulation ------------
    acc = jnp.dot(patches, w_ref[...], preferred_element_type=jnp.float32)

    # Transpose (H*W, Cout) -> (Cout, H*W): lane-dense stores + output already
    # in channel-major order, so the wrapper needs only a metadata reshape.
    acc_t = acc.T + b_ref[...].astype(jnp.float32)

    # Dropout2d(p=0.2) is identity in eval mode.
    out_ref[0] = acc_t.astype(out_ref.dtype)


def dense_layer_forward(x, gamma, beta, running_mean, running_var,
                        weight, bias, *, eps=1e-5):
    """Eval-mode DenseLayer forward. x: NCHW. weight: (Cout, Cin, 3, 3)."""
    n, cin, h, w = x.shape
    cout = weight.shape[0]
    k = 3

    # Fold BN into per-channel scale/shift.
    scale = (gamma / jnp.sqrt(running_var + eps)).astype(jnp.float32)
    shift = (beta - running_mean * scale).astype(jnp.float32)

    # Layout plumbing only: NCHW -> NHWC plus the conv's 1-px zero pad
    # (fused into one cheap XLA copy; the kernel reads this exactly once).
    x_nhwc = jnp.transpose(x, (0, 2, 3, 1))
    x_pad = jnp.pad(x_nhwc, ((0, 0), (1, 1), (1, 1), (0, 0)))

    compute_dtype = x.dtype
    # (Cout, Cin, 3, 3) -> (3, 3, Cin, Cout) -> (9*Cin, Cout); row = (kh, kw, c).
    w_flat = jnp.transpose(weight, (2, 3, 1, 0)).reshape(k * k * cin, cout)
    w_flat = w_flat.astype(compute_dtype)
    b_col = bias.reshape(cout, 1).astype(jnp.float32)
    scale2d = scale.reshape(1, cin)
    shift2d = shift.reshape(1, cin)

    out_flat = pl.pallas_call(
        _dense_layer_kernel,
        out_shape=jax.ShapeDtypeStruct((n, cout, h * w), x.dtype),
        grid_spec=pltpu.PrefetchScalarGridSpec(
            num_scalar_prefetch=0,
            grid=(n,),
            in_specs=[
                pl.BlockSpec((1, cin), lambda i: (0, 0)),                 # scale
                pl.BlockSpec((1, cin), lambda i: (0, 0)),                 # shift
                pl.BlockSpec((k * k * cin, cout), lambda i: (0, 0)),      # weights
                pl.BlockSpec((cout, 1), lambda i: (0, 0)),                # bias
                pl.BlockSpec((1, h + 2, w + 2, cin),
                             lambda i: (i, 0, 0, 0)),                     # x_pad
            ],
            out_specs=pl.BlockSpec((1, cout, h * w), lambda i: (i, 0, 0)),
        ),
        compiler_params=pltpu.CompilerParams(
            dimension_semantics=("parallel",)),
    )(scale2d, shift2d, w_flat, b_col, x_pad)

    # Pure metadata reshape back to PyTorch NCHW (no HBM transpose needed).
    return out_flat.reshape(n, cout, h, w)


if __name__ == "__main__":
    key = jax.random.PRNGKey(0)
    ks = jax.random.split(key, 7)

    N, Cin, H, W = 2, 8, 16, 16
    growth = 16
    eps = 1e-5

    x = jax.random.normal(ks[0], (N, Cin, H, W), jnp.float32)
    weight = 0.1 * jax.random.normal(ks[1], (growth, Cin, 3, 3), jnp.float32)
    bias = 0.1 * jax.random.normal(ks[2], (growth,), jnp.float32)
    gamma = 1.0 + 0.1 * jax.random.normal(ks[3], (Cin,), jnp.float32)
    beta = 0.1 * jax.random.normal(ks[4], (Cin,), jnp.float32)
    running_mean = 0.1 * jax.random.normal(ks[5], (Cin,), jnp.float32)
    running_var = jax.random.uniform(ks[6], (Cin,), jnp.float32, 0.5, 1.5)

    out = jax.block_until_ready(
        dense_layer_forward(x, gamma, beta, running_mean, running_var,
                            weight, bias, eps=eps))
    assert out.shape == (N, growth, H, W), out.shape

    # Reference: eval-mode BN -> ReLU -> Conv2d(3x3, pad=1) + bias (dropout = id).
    scale = gamma / jnp.sqrt(running_var + eps)
    shift = beta - running_mean * scale
    a = jnp.maximum(x * scale[None, :, None, None]
                    + shift[None, :, None, None], 0.0)
    ref = lax.conv_general_dilated(
        a, weight, window_strides=(1, 1), padding=((1, 1), (1, 1)),
        dimension_numbers=("NCHW", "OIHW", "NCHW"))
    ref = ref + bias[None, :, None, None]

    max_err = float(jnp.max(jnp.abs(out - ref)))
    assert jnp.allclose(out, ref, atol=2e-3, rtol=2e-3), max_err
    print("KERNEL_OK")
</pallas_src>

<mosaic_0001>
module attributes {stable_mosaic.version = 11 : i64} {
  func.func @_dense_layer_kernel(%arg0: i32, %arg1: memref<1x8xf32, #tpu.memory_space<vmem>>, %arg2: memref<1x8xf32, #tpu.memory_space<vmem>>, %arg3: memref<72x16xf32, #tpu.memory_space<vmem>>, %arg4: memref<16x1xf32, #tpu.memory_space<vmem>>, %arg5: memref<1x18x18x8xf32, #tpu.memory_space<vmem>>, %arg6: memref<1x16x256xf32, #tpu.memory_space<vmem>>) attributes {dimension_semantics = [#tpu.dimension_semantics<parallel>], iteration_bounds = array<i64: 2>, scalar_prefetch = 0 : i64, scratch_operands = 0 : i64, tpu.core_type = #tpu.core_type<tc>, window_params = [{pipeline_mode = #tpu.pipeline_mode<synchronous>, transform_indices = @transform_0, window_bounds = array<i64: 1, 8>}, {pipeline_mode = #tpu.pipeline_mode<synchronous>, transform_indices = @transform_1, window_bounds = array<i64: 1, 8>}, {pipeline_mode = #tpu.pipeline_mode<synchronous>, transform_indices = @transform_2, window_bounds = array<i64: 72, 16>}, {pipeline_mode = #tpu.pipeline_mode<synchronous>, transform_indices = @transform_3, window_bounds = array<i64: 16, 1>}, {transform_indices = @transform_4, window_bounds = array<i64: 1, 18, 18, 8>}, {transform_indices = @transform_5, window_bounds = array<i64: 1, 16, 256>}]} {
    %c0 = arith.constant 0 : index
    %c0_0 = arith.constant 0 : index
    %c0_1 = arith.constant 0 : index
    %c0_2 = arith.constant 0 : index
    %0 = vector.load %arg5[%c0, %c0_0, %c0_1, %c0_2] : memref<1x18x18x8xf32, #tpu.memory_space<vmem>>, vector<1x18x18x8xf32>
    %1 = vector.shape_cast %0 : vector<1x18x18x8xf32> to vector<18x18x8xf32>
    %c0_3 = arith.constant 0 : index
    %c0_4 = arith.constant 0 : index
    %2 = vector.load %arg1[%c0_3, %c0_4] : memref<1x8xf32, #tpu.memory_space<vmem>>, vector<1x8xf32>
    %3 = vector.shape_cast %2 : vector<1x8xf32> to vector<1x1x8xf32>
    %4 = vector.broadcast %3 : vector<1x1x8xf32> to vector<18x18x8xf32>
    %5 = arith.mulf %1, %4 : vector<18x18x8xf32>
    %c0_5 = arith.constant 0 : index
    %c0_6 = arith.constant 0 : index
    %6 = vector.load %arg2[%c0_5, %c0_6] : memref<1x8xf32, #tpu.memory_space<vmem>>, vector<1x8xf32>
    %7 = vector.shape_cast %6 : vector<1x8xf32> to vector<1x1x8xf32>
    %8 = vector.broadcast %7 : vector<1x1x8xf32> to vector<18x18x8xf32>
    %9 = arith.addf %5, %8 : vector<18x18x8xf32>
    %cst = arith.constant 0.000000e+00 : f32
    %10 = vector.broadcast %cst : f32 to vector<18x18x8xf32>
    %11 = arith.maximumf %9, %10 : vector<18x18x8xf32>
    %12 = tpu.iota {dimensions = array<i32: 0>} : vector<18x18x1xi32>
    %13 = tpu.iota {dimensions = array<i32: 1>} : vector<18x18x1xi32>
    %c1_i32 = arith.constant 1 : i32
    %14 = vector.broadcast %c1_i32 : i32 to vector<18x18x1xi32>
    %15 = arith.cmpi sge, %12, %14 : vector<18x18x1xi32>
    %c16_i32 = arith.constant 16 : i32
    %16 = vector.broadcast %c16_i32 : i32 to vector<18x18x1xi32>
    %17 = arith.cmpi sle, %12, %16 : vector<18x18x1xi32>
    %18 = arith.andi %15, %17 : vector<18x18x1xi1>
    %c1_i32_7 = arith.constant 1 : i32
    %19 = vector.broadcast %c1_i32_7 : i32 to vector<18x18x1xi32>
    %20 = arith.cmpi sge, %13, %19 : vector<18x18x1xi32>
    %21 = arith.andi %18, %20 : vector<18x18x1xi1>
    %c16_i32_8 = arith.constant 16 : i32
    %22 = vector.broadcast %c16_i32_8 : i32 to vector<18x18x1xi32>
    %23 = arith.cmpi sle, %13, %22 : vector<18x18x1xi32>
    %24 = arith.andi %21, %23 : vector<18x18x1xi1>
    %cst_9 = arith.constant 0.000000e+00 : f32
    %25 = vector.shape_cast %24 : vector<18x18x1xi1> to vector<18x18x1xi1>
    %26 = vector.broadcast %25 : vector<18x18x1xi1> to vector<18x18x8xi1>
    %27 = vector.broadcast %cst_9 : f32 to vector<18x18x8xf32>
    %28 = arith.select %26, %11, %27 : vector<18x18x8xi1>, vector<18x18x8xf32>
    %29 = vector.extract_strided_slice %28 {offsets = [0, 0, 0], sizes = [16, 16, 8], strides = [1, 1, 1]} : vector<18x18x8xf32> to vector<16x16x8xf32>
    %30 = vector.shape_cast %29 : vector<16x16x8xf32> to vector<256x8xf32>
    %31 = vector.extract_strided_slice %28 {offsets = [0, 1, 0], sizes = [16, 16, 8], strides = [1, 1, 1]} : vector<18x18x8xf32> to vector<16x16x8xf32>
    %32 = vector.shape_cast %31 : vector<16x16x8xf32> to vector<256x8xf32>
    %33 = vector.extract_strided_slice %28 {offsets = [0, 2, 0], sizes = [16, 16, 8], strides = [1, 1, 1]} : vector<18x18x8xf32> to vector<16x16x8xf32>
    %34 = vector.shape_cast %33 : vector<16x16x8xf32> to vector<256x8xf32>
    %35 = vector.extract_strided_slice %28 {offsets = [1, 0, 0], sizes = [16, 16, 8], strides = [1, 1, 1]} : vector<18x18x8xf32> to vector<16x16x8xf32>
    %36 = vector.shape_cast %35 : vector<16x16x8xf32> to vector<256x8xf32>
    %37 = vector.extract_strided_slice %28 {offsets = [1, 1, 0], sizes = [16, 16, 8], strides = [1, 1, 1]} : vector<18x18x8xf32> to vector<16x16x8xf32>
    %38 = vector.shape_cast %37 : vector<16x16x8xf32> to vector<256x8xf32>
    %39 = vector.extract_strided_slice %28 {offsets = [1, 2, 0], sizes = [16, 16, 8], strides = [1, 1, 1]} : vector<18x18x8xf32> to vector<16x16x8xf32>
    %40 = vector.shape_cast %39 : vector<16x16x8xf32> to vector<256x8xf32>
    %41 = vector.extract_strided_slice %28 {offsets = [2, 0, 0], sizes = [16, 16, 8], strides = [1, 1, 1]} : vector<18x18x8xf32> to vector<16x16x8xf32>
    %42 = vector.shape_cast %41 : vector<16x16x8xf32> to vector<256x8xf32>
    %43 = vector.extract_strided_slice %28 {offsets = [2, 1, 0], sizes = [16, 16, 8], strides = [1, 1, 1]} : vector<18x18x8xf32> to vector<16x16x8xf32>
    %44 = vector.shape_cast %43 : vector<16x16x8xf32> to vector<256x8xf32>
    %45 = vector.extract_strided_slice %28 {offsets = [2, 2, 0], sizes = [16, 16, 8], strides = [1, 1, 1]} : vector<18x18x8xf32> to vector<16x16x8xf32>
    %46 = vector.shape_cast %45 : vector<16x16x8xf32> to vector<256x8xf32>
    %47 = tpu.concatenate %30, %32, %34, %36, %38, %40, %42, %44, %46 in 1 : vector<256x8xf32>, vector<256x8xf32>, vector<256x8xf32>, vector<256x8xf32>, vector<256x8xf32>, vector<256x8xf32>, vector<256x8xf32>, vector<256x8xf32>, vector<256x8xf32> -> vector<256x72xf32>
    %c0_10 = arith.constant 0 : index
    %c0_11 = arith.constant 0 : index
    %48 = vector.load %arg3[%c0_10, %c0_11] : memref<72x16xf32, #tpu.memory_space<vmem>>, vector<72x16xf32>
    %cst_12 = arith.constant dense<0.000000e+00> : vector<256x16xf32>
    %49 = tpu.matmul %47, %48, %cst_12 {dimension_numbers = #tpu.dot_dimension_numbers<[1], [0], [0], [1], [0, 0, 1, 1], [], []>} : vector<256x72xf32>, vector<72x16xf32>, vector<256x16xf32> -> vector<256x16xf32>
    %50 = tpu.transpose %49, [1, 0] : vector<256x16xf32> -> vector<16x256xf32>
    %c0_13 = arith.constant 0 : index
    %c0_14 = arith.constant 0 : index
    %51 = vector.load %arg4[%c0_13, %c0_14] : memref<16x1xf32, #tpu.memory_space<vmem>>, vector<16x1xf32>
    %52 = vector.broadcast %51 : vector<16x1xf32> to vector<16x256xf32>
    %53 = arith.addf %50, %52 : vector<16x256xf32>
    %c0_15 = arith.constant 0 : index
    %c0_16 = arith.constant 0 : index
    %c0_17 = arith.constant 0 : index
    %54 = vector.load %arg6[%c0_15, %c0_16, %c0_17] : memref<1x16x256xf32, #tpu.memory_space<vmem>>, vector<1x16x256xf32>
    %55 = vector.shape_cast %54 : vector<1x16x256xf32> to vector<16x256xf32>
    %56 = vector.shape_cast %53 : vector<16x256xf32> to vector<1x16x256xf32>
    tpu.vector_store %arg6[%c0_15, %c0_16, %c0_17], %56 {strides = array<i32>} : memref<1x16x256xf32, #tpu.memory_space<vmem>>, vector<1x16x256xf32>,
    return
  }
  func.func @transform_0(%arg0: i32) -> (i32, i32) {
    %c0_i32 = arith.constant 0 : i32
    %c0_i32_0 = arith.constant 0 : i32
    %c0_i32_1 = arith.constant 0 : i32
    return %c0_i32, %c0_i32_0 : i32, i32
  }
  func.func @transform_1(%arg0: i32) -> (i32, i32) {
    %c0_i32 = arith.constant 0 : i32
    %c0_i32_0 = arith.constant 0 : i32
    %c0_i32_1 = arith.constant 0 : i32
    return %c0_i32, %c0_i32_0 : i32, i32
  }
  func.func @transform_2(%arg0: i32) -> (i32, i32) {
    %c0_i32 = arith.constant 0 : i32
    %c0_i32_0 = arith.constant 0 : i32
    %c0_i32_1 = arith.constant 0 : i32
    return %c0_i32, %c0_i32_0 : i32, i32
  }
  func.func @transform_3(%arg0: i32) -> (i32, i32) {
    %c0_i32 = arith.constant 0 : i32
    %c0_i32_0 = arith.constant 0 : i32
    %c0_i32_1 = arith.constant 0 : i32
    return %c0_i32, %c0_i32_0 : i32, i32
  }
  func.func @transform_4(%arg0: i32) -> (i32, i32, i32, i32) {
    %c0_i32 = arith.constant 0 : i32
    %c0_i32_0 = arith.constant 0 : i32
    %c0_i32_1 = arith.constant 0 : i32
    %c0_i32_2 = arith.constant 0 : i32
    return %arg0, %c0_i32, %c0_i32_0, %c0_i32_1 : i32, i32, i32, i32
  }
  func.func @transform_5(%arg0: i32) -> (i32, i32, i32) {
    %c0_i32 = arith.constant 0 : i32
    %c0_i32_0 = arith.constant 0 : i32
    %c0_i32_1 = arith.constant 0 : i32
    return %arg0, %c0_i32, %c0_i32_0 : i32, i32, i32
  }
}

</mosaic_0001>

<llo_original>
// kernel: tpu_custom_call.1
$region0: #{tpu_custom_call.1}
  #allocation0 [shape = 'u32[]', space=smem, size = 0x4, offset = 0x4, fixed_abs, tag = 'smem constant byte address 0x4 - core index']
  #allocation1 [shape = 'u32[144,128]{1,0:T(1,128)}', space=vmem, size = 0x12000, scoped, tag = 'internal scratch']
  %s0 = inlined_call_operand.vmem [shape: f32[1,8], index: 0, kind: input, shape index: {}]
  %s1 = inlined_call_operand.vmem [shape: f32[1,8], index: 1, kind: input, shape index: {}]
  %s2 = inlined_call_operand.vmem [shape: f32[72,16], index: 2, kind: input, shape index: {}]
  %s3 = inlined_call_operand.vmem [shape: f32[16,1], index: 3, kind: input, shape index: {}]
  %s4 = inlined_call_operand.vmem [shape: f32[2,18,18,8], index: 4, kind: input, shape index: {}]
  %s5 = inlined_call_operand.hbm [shape: f32[2,16,256], index: 5, kind: output, shape index: {}]
  %s6 = sld [smem:[#allocation0]]
  $region53: #{tpu_custom_call.1} parent=0
    _
  %s8 = ssub.s32 1, %s6
  %s9 = scalar_select 0, %s8, %s6
  $region1: #{tpu_custom_call.1} parent=0
    #allocation2 [shape = 'u8[32768]{0}', space=vmem, size = 0x8000, scoped, tag = 'output window, operand 0']
    #allocation3 [shape = 's32[2]{0}', space=sflag, size = 0x8, scoped, tag = 'scoped memory for tpu_custom_call.1']
    %10 = vsyncpa [#allocation3], 0
    %s11 = scalar_lea.sflag [#allocation3], 1
    %12 = vsyncpa %s11, 0
    loop: start=0, step=1, limit=4
    $region2: #{tpu_custom_call.1} parent=1 // loop_pre_header
      _
    $region3: #{tpu_custom_call.1} parent=1 // loop_header
      %s14 = sphi 0, %s18
      %p15 = scmp.ge.s32.totalorder %s14, 4
      %s22 = sphi 0, %s22
      %s24 = sphi 0, %s22
      %s25 = sphi 0, %s24
      %s39 = sphi 0, %s25
      %s43 = sphi 0, %s43
      %s45 = sphi 0, %s43
      %s46 = sphi 0, %s45
      %s60 = sphi 0, %s46
      %s64 = sphi 0, %s64
      %s66 = sphi 0, %s64
      %s67 = sphi 0, %s66
      %s81 = sphi 0, %s67
      %s85 = sphi 0, %s85
      %s87 = sphi 0, %s85
      %s88 = sphi 0, %s87
      %s102 = sphi 0, %s88
      %s108 = sphi 0, %s110
      %s111 = sphi 0, %s108
      %s112 = sphi 0, %s111
      %s128 = sphi 0, %s112
      %s134 = sphi 0, %s136
      %s137 = sphi 0, %s134
      %s138 = sphi 0, %s137
      %s154 = sphi 0, %s138
    $region4: #{tpu_custom_call.1} parent=1 // loop_header_branch
      %17 = sbr.rel (%p15) target = $region8
    $region5: #{tpu_custom_call.1} parent=1 // loop_body
      %s19 = ssub.s32 %s14, 1
      %s20 = ssub.s32 %s14, 2
      %s21 = sadd.s32 %s14, 1
      %s23 = sadd.s32 %s22, 1
      %p26 = scmp.eq.s32.totalorder %s14, 1
      %p27 = scmp.ne.s32.totalorder %s22, %s24
      %p28 = scmp.eq.s32.totalorder %s14, 0
      %p29 = por %p27, %p28
      %p30 = scmp.ne.s32.totalorder %s22, %s24
      %p31 = scmp.eq.s32.totalorder %s19, 1
      %p32 = por %p30, %p31
      %p33 = scmp.ne.s32.totalorder %s24, %s25
      %p34 = scmp.eq.s32.totalorder %s19, 0
      %p35 = por %p33, %p34
      %p36 = scmp.ne.s32.totalorder %s24, %s25
      %p37 = scmp.eq.s32.totalorder %s20, 1
      %p38 = por %p36, %p37
      %p40 = scmp.ne.s32.totalorder %s25, %s39
      %p41 = scmp.eq.s32.totalorder %s20, 0
      %p42 = por %p40, %p41
      %s44 = sadd.s32 %s43, 1
      %p47 = scmp.eq.s32.totalorder %s14, 1
      %p48 = scmp.ne.s32.totalorder %s43, %s45
      %p49 = scmp.eq.s32.totalorder %s14, 0
      %p50 = por %p48, %p49
      %p51 = scmp.ne.s32.totalorder %s43, %s45
      %p52 = scmp.eq.s32.totalorder %s19, 1
      %p53 = por %p51, %p52
      %p54 = scmp.ne.s32.totalorder %s45, %s46
      %p55 = scmp.eq.s32.totalorder %s19, 0
      %p56 = por %p54, %p55
      %p57 = scmp.ne.s32.totalorder %s45, %s46
      %p58 = scmp.eq.s32.totalorder %s20, 1
      %p59 = por %p57, %p58
      %p61 = scmp.ne.s32.totalorder %s46, %s60
      %p62 = scmp.eq.s32.totalorder %s20, 0
      %p63 = por %p61, %p62
      %s65 = sadd.s32 %s64, 1
      %p68 = scmp.eq.s32.totalorder %s14, 1
      %p69 = scmp.ne.s32.totalorder %s64, %s66
      %p70 = scmp.eq.s32.totalorder %s14, 0
      %p71 = por %p69, %p70
      %p72 = scmp.ne.s32.totalorder %s64, %s66
      %p73 = scmp.eq.s32.totalorder %s19, 1
      %p74 = por %p72, %p73
      %p75 = scmp.ne.s32.totalorder %s66, %s67
      %p76 = scmp.eq.s32.totalorder %s19, 0
      %p77 = por %p75, %p76
      %p78 = scmp.ne.s32.totalorder %s66, %s67
      %p79 = scmp.eq.s32.totalorder %s20, 1
      %p80 = por %p78, %p79
      %p82 = scmp.ne.s32.totalorder %s67, %s81
      %p83 = scmp.eq.s32.totalorder %s20, 0
      %p84 = por %p82, %p83
      %s86 = sadd.s32 %s85, 1
      %p89 = scmp.eq.s32.totalorder %s14, 1
      %p90 = scmp.ne.s32.totalorder %s85, %s87
      %p91 = scmp.eq.s32.totalorder %s14, 0
      %p92 = por %p90, %p91
      %p93 = scmp.ne.s32.totalorder %s85, %s87
      %p94 = scmp.eq.s32.totalorder %s19, 1
      %p95 = por %p93, %p94
      %p96 = scmp.ne.s32.totalorder %s87, %s88
      %p97 = scmp.eq.s32.totalorder %s19, 0
      %p98 = por %p96, %p97
      %p99 = scmp.ne.s32.totalorder %s87, %s88
      %p100 = scmp.eq.s32.totalorder %s20, 1
      %p101 = por %p99, %p100
      %p103 = scmp.ne.s32.totalorder %s88, %s102
      %p104 = scmp.eq.s32.totalorder %s20, 0
      %p105 = por %p103, %p104
      %s106 = ssub.s32 %s14, %s21
      %p107 = scmp.eq.s32.totalorder %s106, 0
      %s109 = sadd.s32 %s108, 1
      %s110 = scalar_select %p107, %s108, %s109
      %p113 = pneg %p107
      %p114 = scmp.eq.s32.totalorder %s14, 1
      %p115 = por %p113, %p114
      %p116 = scmp.ne.s32.totalorder %s108, %s111
      %p117 = scmp.eq.s32.totalorder %s14, 0
      %p118 = por %p116, %p117
      %p119 = scmp.ne.s32.totalorder %s108, %s111
      %p120 = scmp.eq.s32.totalorder %s19, 1
      %p121 = por %p119, %p120
      %p122 = scmp.ne.s32.totalorder %s111, %s112
      %p123 = scmp.eq.s32.totalorder %s19, 0
      %p124 = por %p122, %p123
      %p125 = scmp.ne.s32.totalorder %s111, %s112
      %p126 = scmp.eq.s32.totalorder %s20, 1
      %p127 = por %p125, %p126
      %p129 = scmp.ne.s32.totalorder %s112, %s128
      %p130 = scmp.eq.s32.totalorder %s20, 0
      %p131 = por %p129, %p130
      %s132 = ssub.s32 %s14, %s21
      %p133 = scmp.eq.s32.totalorder %s132, 0
      %s135 = sadd.s32 %s134, 1
      %s136 = scalar_select %p133, %s134, %s135
      %p139 = pneg %p133
      %p140 = scmp.eq.s32.totalorder %s14, 1
      %p141 = por %p139, %p140
      %p142 = scmp.ne.s32.totalorder %s134, %s137
      %p143 = scmp.eq.s32.totalorder %s14, 0
      %p144 = por %p142, %p143
      %p145 = scmp.ne.s32.totalorder %s134, %s137
      %p146 = scmp.eq.s32.totalorder %s19, 1
      %p147 = por %p145, %p146
      %p148 = scmp.ne.s32.totalorder %s137, %s138
      %p149 = scmp.eq.s32.totalorder %s19, 0
      %p150 = por %p148, %p149
      %p151 = scmp.ne.s32.totalorder %s137, %s138
      %p152 = scmp.eq.s32.totalorder %s20, 1
      %p153 = por %p151, %p152
      %p155 = scmp.ne.s32.totalorder %s138, %s154
      %p156 = scmp.eq.s32.totalorder %s20, 0
      %p157 = por %p155, %p156
      %p158 = scmp.le.s32.totalorder 1, %s14
      %p159 = scmp.lt.s32.totalorder %s14, 3
      %p160 = pnand %p158, %p159
      %p161 = pneg %p160
      // Predicated region
      $region9: #{tpu_custom_call.1} parent=5 // pred_check
        _
      $region10: #{tpu_custom_call.1} parent=5 // pred_check_branch
        %163 = sbr.rel (%p160) target = $region12
      $region11: #{tpu_custom_call.1} parent=5 // pred_region
        %s164 = ssub.s32 %s14, 1
        // Predicated region
        $region13: #{tpu_custom_call.1} parent=11 // pred_check
          %p165 = pneg %p35
        $region14: #{tpu_custom_call.1} parent=11 // pred_check_branch
          %167 = sbr.rel (%p165) target = $region16
        $region15: #{tpu_custom_call.1} parent=11 // pred_region
          _
        $region16: #{tpu_custom_call.1} parent=11 // pred_fallthru
          _
        // Predicated region
        $region17: #{tpu_custom_call.1} parent=11 // pred_check
          %p168 = pneg %p56
        $region18: #{tpu_custom_call.1} parent=11 // pred_check_branch
          %170 = sbr.rel (%p168) target = $region20
        $region19: #{tpu_custom_call.1} parent=11 // pred_region
          _
        $region20: #{tpu_custom_call.1} parent=11 // pred_fallthru
          _
        // Predicated region
        $region21: #{tpu_custom_call.1} parent=11 // pred_check
          %p171 = pneg %p77
        $region22: #{tpu_custom_call.1} parent=11 // pred_check_branch
          %173 = sbr.rel (%p171) target = $region24
        $region23: #{tpu_custom_call.1} parent=11 // pred_region
          _
        $region24: #{tpu_custom_call.1} parent=11 // pred_fallthru
          _
        // Predicated region
        $region25: #{tpu_custom_call.1} parent=11 // pred_check
          %p174 = pneg %p98
        $region26: #{tpu_custom_call.1} parent=11 // pred_check_branch
          %176 = sbr.rel (%p174) target = $region28
        $region27: #{tpu_custom_call.1} parent=11 // pred_region
          _
        $region28: #{tpu_custom_call.1} parent=11 // pred_fallthru
          _
      $region12: #{tpu_custom_call.1} parent=5 // pred_fallthru
        _
      %p177 = scmp.lt.s32.totalorder %s14, 2
      // Predicated region
      $region29: #{tpu_custom_call.1} parent=5 // pred_check
        %p178 = pneg %p177
      $region30: #{tpu_custom_call.1} parent=5 // pred_check_branch
        %180 = sbr.rel (%p178) target = $region32
      $region31: #{tpu_custom_call.1} parent=5 // pred_region
        // Predicated region
        $region33: #{tpu_custom_call.1} parent=31 // pred_check
          %p181 = pneg %p118
        $region34: #{tpu_custom_call.1} parent=31 // pred_check_branch
          %183 = sbr.rel (%p181) target = $region36
        $region35: #{tpu_custom_call.1} parent=31 // pred_region
          %p184 = scmp.lt.s32.totalorder %s14, 1
          %s185 = scalar_select %p184, %s14, 1
          %s186 = smul.addr %s185, 54
          %s187 = smul.addr %s186, 8
          %s188 = scalar_lea.vmem %s4, %s187
        $region36: #{tpu_custom_call.1} parent=31 // pred_fallthru
          _
      $region32: #{tpu_custom_call.1} parent=5 // pred_fallthru
        _
      %p189 = scmp.le.s32.totalorder 1, %s14
      %p190 = scmp.lt.s32.totalorder %s14, 3
      %p191 = pnand %p189, %p190
      %p192 = pneg %p191
      // Predicated region
      $region37: #{tpu_custom_call.1} parent=5 // pred_check
        _
      $region38: #{tpu_custom_call.1} parent=5 // pred_check_branch
        %194 = sbr.rel (%p191) target = $region40
      $region39: #{tpu_custom_call.1} parent=5 // pred_region
        %s195 = ssub.s32 %s14, 1
        %p196 = pneg %p35
        %p197 = pneg %p32
        %p198 = pneg %p56
        %p199 = pneg %p53
        %p200 = pneg %p77
        %p201 = pneg %p74
        %p202 = pneg %p98
        %p203 = pneg %p95
        %p204 = scmp.lt.s32.totalorder %s19, 1
        %s205 = scalar_select %p204, %s19, 1
        %s206 = smul.addr %s205, 54
        %s207 = smul.addr %s206, 8
        %s208 = scalar_lea.vmem %s4, %s207
        %p209 = pneg %p124
        %p210 = pneg %p121
        %p211 = pneg %p150
        %p212 = pneg %p147
        %s213 = sand.u32 %s137, 1
        %s214 = scalar_lea.sflag [#allocation3], %s213
        %s215 = sand.u32 %s137, 1
        %s216 = smul.addr %s215, 32
        %s217 = scalar_lea.vmem [#allocation2], %s216
        %p218 = scmp.lt.s32.totalorder %s19, 1
        %s219 = scalar_select %p218, %s19, 1
        %s220 = smul.addr %s219, 54
        %s221 = smul.addr %s220, 8
        %s222 = scalar_lea.vmem %s4, %s221
        %v223 = vld [vmem:[%s222] sm:$0xff]
        %v224 = vld [vmem:[%s222 + $0x8] sm:$0xff]
        %v225 = vld [vmem:[%s222 + $0x10] sm:$0x3]
        %v226 = vld [vmem:[%s222 + $0x18] sm:$0xff]
        %v227 = vld [vmem:[%s222 + $0x20] sm:$0xff]
        %v228 = vld [vmem:[%s222 + $0x28] sm:$0x3]
        %v229 = vld [vmem:[%s222 + $0x30] sm:$0xff]
        %v230 = vld [vmem:[%s222 + $0x38] sm:$0xff]
        %v231 = vld [vmem:[%s222 + $0x40] sm:$0x3]
        %v232 = vld [vmem:[%s222 + $0x48] sm:$0xff]
        %v233 = vld [vmem:[%s222 + $0x50] sm:$0xff]
        %v234 = vld [vmem:[%s222 + $0x58] sm:$0x3]
        %v235 = vld [vmem:[%s222 + $0x60] sm:$0xff]
        %v236 = vld [vmem:[%s222 + $0x68] sm:$0xff]
        %v237 = vld [vmem:[%s222 + $0x70] sm:$0x3]
        %v238 = vld [vmem:[%s222 + $0x78] sm:$0xff]
        %v239 = vld [vmem:[%s222 + $0x80] sm:$0xff]
        %v240 = vld [vmem:[%s222 + $0x88] sm:$0x3]
        %v241 = vld [vmem:[%s222 + $0x90] sm:$0xff]
        %v242 = vld [vmem:[%s222 + $0x98] sm:$0xff]
        %v243 = vld [vmem:[%s222 + $0xa0] sm:$0x3]
        %v244 = vld [vmem:[%s222 + $0xa8] sm:$0xff]
        %v245 = vld [vmem:[%s222 + $0xb0] sm:$0xff]
        %v246 = vld [vmem:[%s222 + $0xb8] sm:$0x3]
        %v247 = vld [vmem:[%s222 + $0xc0] sm:$0xff]
        %v248 = vld [vmem:[%s222 + $0xc8] sm:$0xff]
        %v249 = vld [vmem:[%s222 + $0xd0] sm:$0x3]
        %v250 = vld [vmem:[%s222 + $0xd8] sm:$0xff]
        %v251 = vld [vmem:[%s222 + $0xe0] sm:$0xff]
        %v252 = vld [vmem:[%s222 + $0xe8] sm:$0x3]
        %v253 = vld [vmem:[%s222 + $0xf0] sm:$0xff]
        %v254 = vld [vmem:[%s222 + $0xf8] sm:$0xff]
        %v255 = vld [vmem:[%s222 + $0x100] sm:$0x3]
        %v256 = vld [vmem:[%s222 + $0x108] sm:$0xff]
        %v257 = vld [vmem:[%s222 + $0x110] sm:$0xff]
        %v258 = vld [vmem:[%s222 + $0x118] sm:$0x3]
        %v259 = vld [vmem:[%s222 + $0x120] sm:$0xff]
        %v260 = vld [vmem:[%s222 + $0x128] sm:$0xff]
        %v261 = vld [vmem:[%s222 + $0x130] sm:$0x3]
        %v262 = vld [vmem:[%s222 + $0x138] sm:$0xff]
        %v263 = vld [vmem:[%s222 + $0x140] sm:$0xff]
        %v264 = vld [vmem:[%s222 + $0x148] sm:$0x3]
        %v265 = vld [vmem:[%s222 + $0x150] sm:$0xff]
        %v266 = vld [vmem:[%s222 + $0x158] sm:$0xff]
        %v267 = vld [vmem:[%s222 + $0x160] sm:$0x3]
        %v268 = vld [vmem:[%s222 + $0x168] sm:$0xff]
        %v269 = vld [vmem:[%s222 + $0x170] sm:$0xff]
        %v270 = vld [vmem:[%s222 + $0x178] sm:$0x3]
        %v271 = vld [vmem:[%s222 + $0x180] sm:$0xff]
        %v272 = vld [vmem:[%s222 + $0x188] sm:$0xff]
        %v273 = vld [vmem:[%s222 + $0x190] sm:$0x3]
        %v274 = vld [vmem:[%s222 + $0x198] sm:$0xff]
        %v275 = vld [vmem:[%s222 + $0x1a0] sm:$0xff]
        %v276 = vld [vmem:[%s222 + $0x1a8] sm:$0x3]
        %v277 = vld [vmem:[%s0] sm:$0x1]
        %v279 = vlaneseq
        %v280 = vshrl.u32 %v279, 7
        %v281 = vsub.s32 0, %v280
        %v282 = vrot.slane %v277, %v281
        %v284 = vmul.f32 %v223, %v282
        %v285 = vmul.f32 %v224, %v282
        %v286 = vmul.f32 %v225, %v282
        %v287 = vmul.f32 %v226, %v282
        %v288 = vmul.f32 %v227, %v282
        %v289 = vmul.f32 %v228, %v282
        %v290 = vmul.f32 %v229, %v282
        %v291 = vmul.f32 %v230, %v282
        %v292 = vmul.f32 %v231, %v282
        %v293 = vmul.f32 %v232, %v282
        %v294 = vmul.f32 %v233, %v282
        %v295 = vmul.f32 %v234, %v282
        %v296 = vmul.f32 %v235, %v282
        %v297 = vmul.f32 %v236, %v282
        %v298 = vmul.f32 %v237, %v282
        %v299 = vmul.f32 %v238, %v282
        %v300 = vmul.f32 %v239, %v282
        %v301 = vmul.f32 %v240, %v282
        %v302 = vmul.f32 %v241, %v282
        %v303 = vmul.f32 %v242, %v282
        %v304 = vmul.f32 %v243, %v282
        %v305 = vmul.f32 %v244, %v282
        %v306 = vmul.f32 %v245, %v282
        %v307 = vmul.f32 %v246, %v282
        %v308 = vmul.f32 %v247, %v282
        %v309 = vmul.f32 %v248, %v282
        %v310 = vmul.f32 %v249, %v282
        %v311 = vmul.f32 %v250, %v282
        %v312 = vmul.f32 %v251, %v282
        %v313 = vmul.f32 %v252, %v282
        %v314 = vmul.f32 %v253, %v282
        %v315 = vmul.f32 %v254, %v282
        %v316 = vmul.f32 %v255, %v282
        %v317 = vmul.f32 %v256, %v282
        %v318 = vmul.f32 %v257, %v282
        %v319 = vmul.f32 %v258, %v282
        %v320 = vmul.f32 %v259, %v282
        %v321 = vmul.f32 %v260, %v282
        %v322 = vmul.f32 %v261, %v282
        %v323 = vmul.f32 %v262, %v282
        %v324 = vmul.f32 %v263, %v282
        %v325 = vmul.f32 %v264, %v282
        %v326 = vmul.f32 %v265, %v282
        %v327 = vmul.f32 %v266, %v282
        %v328 = vmul.f32 %v267, %v282
        %v329 = vmul.f32 %v268, %v282
        %v330 = vmul.f32 %v269, %v282
        %v331 = vmul.f32 %v270, %v282
        %v332 = vmul.f32 %v271, %v282
        %v333 = vmul.f32 %v272, %v282
        %v334 = vmul.f32 %v273, %v282
        %v335 = vmul.f32 %v274, %v282
        %v336 = vmul.f32 %v275, %v282
        %v337 = vmul.f32 %v276, %v282
        %v338 = vld [vmem:[%s1] sm:$0x1]
        %v340 = vlaneseq
        %v341 = vshrl.u32 %v340, 7
        %v342 = vsub.s32 0, %v341
        %v343 = vrot.slane %v338, %v342
        %v345 = vadd.f32 %v284, %v343
        %v346 = vadd.f32 %v285, %v343
        %v347 = vadd.f32 %v286, %v343
        %v348 = vadd.f32 %v287, %v343
        %v349 = vadd.f32 %v288, %v343
        %v350 = vadd.f32 %v289, %v343
        %v351 = vadd.f32 %v290, %v343
        %v352 = vadd.f32 %v291, %v343
        %v353 = vadd.f32 %v292, %v343
        %v354 = vadd.f32 %v293, %v343
        %v355 = vadd.f32 %v294, %v343
        %v356 = vadd.f32 %v295, %v343
        %v357 = vadd.f32 %v296, %v343
        %v358 = vadd.f32 %v297, %v343
        %v359 = vadd.f32 %v298, %v343
        %v360 = vadd.f32 %v299, %v343
        %v361 = vadd.f32 %v300, %v343
        %v362 = vadd.f32 %v301, %v343
        %v363 = vadd.f32 %v302, %v343
        %v364 = vadd.f32 %v303, %v343
        %v365 = vadd.f32 %v304, %v343
        %v366 = vadd.f32 %v305, %v343
        %v367 = vadd.f32 %v306, %v343
        %v368 = vadd.f32 %v307, %v343
        %v369 = vadd.f32 %v308, %v343
        %v370 = vadd.f32 %v309, %v343
        %v371 = vadd.f32 %v310, %v343
        %v372 = vadd.f32 %v311, %v343
        %v373 = vadd.f32 %v312, %v343
        %v374 = vadd.f32 %v313, %v343
        %v375 = vadd.f32 %v314, %v343
        %v376 = vadd.f32 %v315, %v343
        %v377 = vadd.f32 %v316, %v343
        %v378 = vadd.f32 %v317, %v343
        %v379 = vadd.f32 %v318, %v343
        %v380 = vadd.f32 %v319, %v343
        %v381 = vadd.f32 %v320, %v343
        %v382 = vadd.f32 %v321, %v343
        %v383 = vadd.f32 %v322, %v343
        %v384 = vadd.f32 %v323, %v343
        %v385 = vadd.f32 %v324, %v343
        %v386 = vadd.f32 %v325, %v343
        %v387 = vadd.f32 %v326, %v343
        %v388 = vadd.f32 %v327, %v343
        %v389 = vadd.f32 %v328, %v343
        %v390 = vadd.f32 %v329, %v343
        %v391 = vadd.f32 %v330, %v343
        %v392 = vadd.f32 %v331, %v343
        %v393 = vadd.f32 %v332, %v343
        %v394 = vadd.f32 %v333, %v343
        %v395 = vadd.f32 %v334, %v343
        %v396 = vadd.f32 %v335, %v343
        %v397 = vadd.f32 %v336, %v343
        %v398 = vadd.f32 %v337, %v343
        %v399 = vmax.f32 %v345, 0.0
        %v400 = vmax.f32 %v346, 0.0
        %v401 = vmax.f32 %v347, 0.0
        %v402 = vmax.f32 %v348, 0.0
        %v403 = vmax.f32 %v349, 0.0
        %v404 = vmax.f32 %v350, 0.0
        %v405 = vmax.f32 %v351, 0.0
        %v406 = vmax.f32 %v352, 0.0
        %v407 = vmax.f32 %v353, 0.0
        %v408 = vmax.f32 %v354, 0.0
        %v409 = vmax.f32 %v355, 0.0
        %v410 = vmax.f32 %v356, 0.0
        %v411 = vmax.f32 %v357, 0.0
        %v412 = vmax.f32 %v358, 0.0
        %v413 = vmax.f32 %v359, 0.0
        %v414 = vmax.f32 %v360, 0.0
        %v415 = vmax.f32 %v361, 0.0
        %v416 = vmax.f32 %v362, 0.0
        %v417 = vmax.f32 %v363, 0.0
        %v418 = vmax.f32 %v364, 0.0
        %v419 = vmax.f32 %v365, 0.0
        %v420 = vmax.f32 %v366, 0.0
        %v421 = vmax.f32 %v367, 0.0
        %v422 = vmax.f32 %v368, 0.0
        %v423 = vmax.f32 %v369, 0.0
        %v424 = vmax.f32 %v370, 0.0
        %v425 = vmax.f32 %v371, 0.0
        %v426 = vmax.f32 %v372, 0.0
        %v427 = vmax.f32 %v373, 0.0
        %v428 = vmax.f32 %v374, 0.0
        %v429 = vmax.f32 %v375, 0.0
        %v430 = vmax.f32 %v376, 0.0
        %v431 = vmax.f32 %v377, 0.0
        %v432 = vmax.f32 %v378, 0.0
        %v433 = vmax.f32 %v379, 0.0
        %v434 = vmax.f32 %v380, 0.0
        %v435 = vmax.f32 %v381, 0.0
        %v436 = vmax.f32 %v382, 0.0
        %v437 = vmax.f32 %v383, 0.0
        %v438 = vmax.f32 %v384, 0.0
        %v439 = vmax.f32 %v385, 0.0
        %v440 = vmax.f32 %v386, 0.0
        %v441 = vmax.f32 %v387, 0.0
        %v442 = vmax.f32 %v388, 0.0
        %v443 = vmax.f32 %v389, 0.0
        %v444 = vmax.f32 %v390, 0.0
        %v445 = vmax.f32 %v391, 0.0
        %v446 = vmax.f32 %v392, 0.0
        %v447 = vmax.f32 %v393, 0.0
        %v448 = vmax.f32 %v394, 0.0
        %v449 = vmax.f32 %v395, 0.0
        %v450 = vmax.f32 %v396, 0.0
        %v451 = vmax.f32 %v397, 0.0
        %v452 = vmax.f32 %v398, 0.0
        %v453 = vlaneseq
        %v454 = vshrl.u32 %v453, 7
        %v455 = vadd.s32 %v454, 8
        %v456 = vadd.s32 %v454, 16
        %vm457 = vcmp.ge.s32.totalorder %v454, 1
        %vm458 = vcmp.ge.s32.totalorder %v455, 1
        %vm459 = vcmp.ge.s32.totalorder %v456, 1
        %vm460 = vmand 0, %vm457
        %vm461 = vmand 0, %vm458
        %vm462 = vmand 0, %vm459
        %vm463 = vmand 1, %vm457
        %vm464 = vmand 1, %vm458
        %vm465 = vmand 1, %vm459
        %vm466 = vcmp.le.s32.totalorder %v454, 16
        %vm467 = vcmp.le.s32.totalorder %v455, 16
        %vm468 = vcmp.le.s32.totalorder %v456, 16
        %vm469 = vmand %vm460, %vm466
        %vm470 = vmand %vm461, %vm467
        %vm471 = vmand %vm462, %vm468
        %vm472 = vmand %vm463, %vm466
        %vm473 = vmand %vm464, %vm467
        %vm474 = vmand %vm465, %vm468
        %v475 = vsel %vm469, 1, 0
        %v476 = vsel %vm470, 1, 0
        %v477 = vsel %vm471, 1, 0
        %v478 = vsel %vm472, 1, 0
        %v479 = vsel %vm473, 1, 0
        %v480 = vsel %vm474, 1, 0
        %vm481 = vcmp.eq.s32.totalorder %v475, 1
        %vm482 = vcmp.eq.s32.totalorder %v476, 1
        %vm483 = vcmp.eq.s32.totalorder %v477, 1
        %vm484 = vcmp.eq.s32.totalorder %v478, 1
        %vm485 = vcmp.eq.s32.totalorder %v479, 1
        %vm486 = vcmp.eq.s32.totalorder %v480, 1
        %v487 = vsel %vm481, %v399, 0.0
        %v488 = vsel %vm482, %v400, 0.0
        %v489 = vsel %vm483, %v401, 0.0
        %v490 = vsel %vm484, %v402, 0.0
        %v491 = vsel %vm485, %v403, 0.0
        %v492 = vsel %vm486, %v404, 0.0
        %v493 = vsel %vm484, %v405, 0.0
        %v494 = vsel %vm485, %v406, 0.0
        %v495 = vsel %vm486, %v407, 0.0
        %v496 = vsel %vm484, %v408, 0.0
        %v497 = vsel %vm485, %v409, 0.0
        %v498 = vsel %vm486, %v410, 0.0
        %v499 = vsel %vm484, %v411, 0.0
        %v500 = vsel %vm485, %v412, 0.0
        %v501 = vsel %vm486, %v413, 0.0
        %v502 = vsel %vm484, %v414, 0.0
        %v503 = vsel %vm485, %v415, 0.0
        %v504 = vsel %vm486, %v416, 0.0
        %v505 = vsel %vm484, %v417, 0.0
        %v506 = vsel %vm485, %v418, 0.0
        %v507 = vsel %vm486, %v419, 0.0
        %v508 = vsel %vm484, %v420, 0.0
        %v509 = vsel %vm485, %v421, 0.0
        %v510 = vsel %vm486, %v422, 0.0
        %v511 = vsel %vm484, %v423, 0.0
        %v512 = vsel %vm485, %v424, 0.0
        %v513 = vsel %vm486, %v425, 0.0
        %v514 = vsel %vm484, %v426, 0.0
        %v515 = vsel %vm485, %v427, 0.0
        %v516 = vsel %vm486, %v428, 0.0
        %v517 = vsel %vm484, %v429, 0.0
        %v518 = vsel %vm485, %v430, 0.0
        %v519 = vsel %vm486, %v431, 0.0
        %v520 = vsel %vm484, %v432, 0.0
        %v521 = vsel %vm485, %v433, 0.0
        %v522 = vsel %vm486, %v434, 0.0
        %v523 = vsel %vm484, %v435, 0.0
        %v524 = vsel %vm485, %v436, 0.0
        %v525 = vsel %vm486, %v437, 0.0
        %v526 = vsel %vm484, %v438, 0.0
        %v527 = vsel %vm485, %v439, 0.0
        %v528 = vsel %vm486, %v440, 0.0
        %v529 = vsel %vm484, %v441, 0.0
        %v530 = vsel %vm485, %v442, 0.0
        %v531 = vsel %vm486, %v443, 0.0
        %v532 = vsel %vm484, %v444, 0.0
        %v533 = vsel %vm485, %v445, 0.0
        %v534 = vsel %vm486, %v446, 0.0
        %v535 = vsel %vm484, %v447, 0.0
        %v536 = vsel %vm485, %v448, 0.0
        %v537 = vsel %vm486, %v449, 0.0
        %v538 = vsel %vm481, %v450, 0.0
        %v539 = vsel %vm482, %v451, 0.0
        %v540 = vsel %vm483, %v452, 0.0
        %vm589 = vcmask 1046528
        %v590 = vrot.slane %v487, 1
        %v591 = vrot.slane %v488, 1
        %v592 = vsel %vm589, %v590, %v591
        %v593 = vrot.slane %v489, 1
        %v594 = vsel %vm589, %v591, %v593
        %v595 = vrot.slane %v490, 1
        %v596 = vrot.slane %v491, 1
        %v597 = vsel %vm589, %v595, %v596
        %v598 = vrot.slane %v492, 1
        %v599 = vsel %vm589, %v596, %v598
        %v600 = vrot.slane %v493, 1
        %v601 = vrot.slane %v494, 1
        %v602 = vsel %vm589, %v600, %v601
        %v603 = vrot.slane %v495, 1
        %v604 = vsel %vm589, %v601, %v603
        %v605 = vrot.slane %v496, 1
        %v606 = vrot.slane %v497, 1
        %v607 = vsel %vm589, %v605, %v606
        %v608 = vrot.slane %v498, 1
        %v609 = vsel %vm589, %v606, %v608
        %v610 = vrot.slane %v499, 1
        %v611 = vrot.slane %v500, 1
        %v612 = vsel %vm589, %v610, %v611
        %v613 = vrot.slane %v501, 1
        %v614 = vsel %vm589, %v611, %v613
        %v615 = vrot.slane %v502, 1
        %v616 = vrot.slane %v503, 1
        %v617 = vsel %vm589, %v615, %v616
        %v618 = vrot.slane %v504, 1
        %v619 = vsel %vm589, %v616, %v618
        %v620 = vrot.slane %v505, 1
        %v621 = vrot.slane %v506, 1
        %v622 = vsel %vm589, %v620, %v621
        %v623 = vrot.slane %v507, 1
        %v624 = vsel %vm589, %v621, %v623
        %v625 = vrot.slane %v508, 1
        %v626 = vrot.slane %v509, 1
        %v627 = vsel %vm589, %v625, %v626
        %v628 = vrot.slane %v510, 1
        %v629 = vsel %vm589, %v626, %v628
        %v630 = vrot.slane %v511, 1
        %v631 = vrot.slane %v512, 1
        %v632 = vsel %vm589, %v630, %v631
        %v633 = vrot.slane %v513, 1
        %v634 = vsel %vm589, %v631, %v633
        %v635 = vrot.slane %v514, 1
        %v636 = vrot.slane %v515, 1
        %v637 = vsel %vm589, %v635, %v636
        %v638 = vrot.slane %v516, 1
        %v639 = vsel %vm589, %v636, %v638
        %v640 = vrot.slane %v517, 1
        %v641 = vrot.slane %v518, 1
        %v642 = vsel %vm589, %v640, %v641
        %v643 = vrot.slane %v519, 1
        %v644 = vsel %vm589, %v641, %v643
        %v645 = vrot.slane %v520, 1
        %v646 = vrot.slane %v521, 1
        %v647 = vsel %vm589, %v645, %v646
        %v648 = vrot.slane %v522, 1
        %v649 = vsel %vm589, %v646, %v648
        %v650 = vrot.slane %v523, 1
        %v651 = vrot.slane %v524, 1
        %v652 = vsel %vm589, %v650, %v651
        %v653 = vrot.slane %v525, 1
        %v654 = vsel %vm589, %v651, %v653
        %v655 = vrot.slane %v526, 1
        %v656 = vrot.slane %v527, 1
        %v657 = vsel %vm589, %v655, %v656
        %v658 = vrot.slane %v528, 1
        %v659 = vsel %vm589, %v656, %v658
        %v660 = vrot.slane %v529, 1
        %v661 = vrot.slane %v530, 1
        %v662 = vsel %vm589, %v660, %v661
        %v663 = vrot.slane %v531, 1
        %v664 = vsel %vm589, %v661, %v663
        %v665 = vrot.slane %v532, 1
        %v666 = vrot.slane %v533, 1
        %v667 = vsel %vm589, %v665, %v666
        %v668 = vrot.slane %v534, 1
        %v669 = vsel %vm589, %v666, %v668
        %vm670 = vcmask 1045504
        %v671 = vrot.slane %v487, 2
        %v672 = vrot.slane %v488, 2
        %v673 = vsel %vm670, %v671, %v672
        %v674 = vrot.slane %v489, 2
        %v675 = vsel %vm670, %v672, %v674
        %v676 = vrot.slane %v490, 2
        %v677 = vrot.slane %v491, 2
        %v678 = vsel %vm670, %v676, %v677
        %v679 = vrot.slane %v492, 2
        %v680 = vsel %vm670, %v677, %v679
        %v681 = vrot.slane %v493, 2
        %v682 = vrot.slane %v494, 2
        %v683 = vsel %vm670, %v681, %v682
        %v684 = vrot.slane %v495, 2
        %v685 = vsel %vm670, %v682, %v684
        %v686 = vrot.slane %v496, 2
        %v687 = vrot.slane %v497, 2
        %v688 = vsel %vm670, %v686, %v687
        %v689 = vrot.slane %v498, 2
        %v690 = vsel %vm670, %v687, %v689
        %v691 = vrot.slane %v499, 2
        %v692 = vrot.slane %v500, 2
        %v693 = vsel %vm670, %v691, %v692
        %v694 = vrot.slane %v501, 2
        %v695 = vsel %vm670, %v692, %v694
        %v696 = vrot.slane %v502, 2
        %v697 = vrot.slane %v503, 2
        %v698 = vsel %vm670, %v696, %v697
        %v699 = vrot.slane %v504, 2
        %v700 = vsel %vm670, %v697, %v699
        %v701 = vrot.slane %v505, 2
        %v702 = vrot.slane %v506, 2
        %v703 = vsel %vm670, %v701, %v702
        %v704 = vrot.slane %v507, 2
        %v705 = vsel %vm670, %v702, %v704
        %v706 = vrot.slane %v508, 2
        %v707 = vrot.slane %v509, 2
        %v708 = vsel %vm670, %v706, %v707
        %v709 = vrot.slane %v510, 2
        %v710 = vsel %vm670, %v707, %v709
        %v711 = vrot.slane %v511, 2
        %v712 = vrot.slane %v512, 2
        %v713 = vsel %vm670, %v711, %v712
        %v714 = vrot.slane %v513, 2
        %v715 = vsel %vm670, %v712, %v714
        %v716 = vrot.slane %v514, 2
        %v717 = vrot.slane %v515, 2
        %v718 = vsel %vm670, %v716, %v717
        %v719 = vrot.slane %v516, 2
        %v720 = vsel %vm670, %v717, %v719
        %v721 = vrot.slane %v517, 2
        %v722 = vrot.slane %v518, 2
        %v723 = vsel %vm670, %v721, %v722
        %v724 = vrot.slane %v519, 2
        %v725 = vsel %vm670, %v722, %v724
        %v726 = vrot.slane %v520, 2
        %v727 = vrot.slane %v521, 2
        %v728 = vsel %vm670, %v726, %v727
        %v729 = vrot.slane %v522, 2
        %v730 = vsel %vm670, %v727, %v729
        %v731 = vrot.slane %v523, 2
        %v732 = vrot.slane %v524, 2
        %v733 = vsel %vm670, %v731, %v732
        %v734 = vrot.slane %v525, 2
        %v735 = vsel %vm670, %v732, %v734
        %v736 = vrot.slane %v526, 2
        %v737 = vrot.slane %v527, 2
        %v738 = vsel %vm670, %v736, %v737
        %v739 = vrot.slane %v528, 2
        %v740 = vsel %vm670, %v737, %v739
        %v741 = vrot.slane %v529, 2
        %v742 = vrot.slane %v530, 2
        %v743 = vsel %vm670, %v741, %v742
        %v744 = vrot.slane %v531, 2
        %v745 = vsel %vm670, %v742, %v744
        %v746 = vrot.slane %v532, 2
        %v747 = vrot.slane %v533, 2
        %v748 = vsel %vm670, %v746, %v747
        %v749 = vrot.slane %v534, 2
        %v750 = vsel %vm670, %v747, %v749
        %v754 = vrot.slane %v535, 1
        %v755 = vrot.slane %v536, 1
        %v756 = vsel %vm589, %v754, %v755
        %v757 = vrot.slane %v537, 1
        %v758 = vsel %vm589, %v755, %v757
        %v759 = vrot.slane %v535, 2
        %v760 = vrot.slane %v536, 2
        %v761 = vsel %vm670, %v759, %v760
        %v762 = vrot.slane %v537, 2
        %v763 = vsel %vm670, %v760, %v762
        %v767 = vrot.slane %v538, 1
        %v768 = vrot.slane %v539, 1
        %v769 = vsel %vm589, %v767, %v768
        %v770 = vrot.slane %v540, 1
        %v771 = vsel %vm589, %v768, %v770
        %v772 = vrot.slane %v538, 2
        %v773 = vrot.slane %v539, 2
        %v774 = vsel %vm670, %v772, %v773
        %v775 = vrot.slane %v540, 2
        %v776 = vsel %vm670, %v773, %v775
        %777 = vrot.lane.b32.xlu0 %v592, 8
        %v778 = vpop.permute.xlu0 %777
        %779 = vrot.lane.b32.xlu0 %v594, 8
        %v780 = vpop.permute.xlu0 %779
        %781 = vrot.lane.b32.xlu0 %v597, 8
        %v782 = vpop.permute.xlu0 %781
        %783 = vrot.lane.b32.xlu0 %v599, 8
        %v784 = vpop.permute.xlu0 %783
        %785 = vrot.lane.b32.xlu0 %v602, 8
        %v786 = vpop.permute.xlu0 %785
        %787 = vrot.lane.b32.xlu0 %v604, 8
        %v788 = vpop.permute.xlu0 %787
        %789 = vrot.lane.b32.xlu0 %v607, 8
        %v790 = vpop.permute.xlu0 %789
        %791 = vrot.lane.b32.xlu0 %v609, 8
        %v792 = vpop.permute.xlu0 %791
        %793 = vrot.lane.b32.xlu0 %v612, 8
        %v794 = vpop.permute.xlu0 %793
        %795 = vrot.lane.b32.xlu0 %v614, 8
        %v796 = vpop.permute.xlu0 %795
        %797 = vrot.lane.b32.xlu0 %v617, 8
        %v798 = vpop.permute.xlu0 %797
        %799 = vrot.lane.b32.xlu0 %v619, 8
        %v800 = vpop.permute.xlu0 %799
        %801 = vrot.lane.b32.xlu0 %v622, 8
        %v802 = vpop.permute.xlu0 %801
        %803 = vrot.lane.b32.xlu0 %v624, 8
        %v804 = vpop.permute.xlu0 %803
        %805 = vrot.lane.b32.xlu0 %v627, 8
        %v806 = vpop.permute.xlu0 %805
        %807 = vrot.lane.b32.xlu0 %v629, 8
        %v808 = vpop.permute.xlu0 %807
        %809 = vrot.lane.b32.xlu0 %v632, 8
        %v810 = vpop.permute.xlu0 %809
        %811 = vrot.lane.b32.xlu0 %v634, 8
        %v812 = vpop.permute.xlu0 %811
        %813 = vrot.lane.b32.xlu0 %v637, 8
        %v814 = vpop.permute.xlu0 %813
        %815 = vrot.lane.b32.xlu0 %v639, 8
        %v816 = vpop.permute.xlu0 %815
        %817 = vrot.lane.b32.xlu0 %v642, 8
        %v818 = vpop.permute.xlu0 %817
        %819 = vrot.lane.b32.xlu0 %v644, 8
        %v820 = vpop.permute.xlu0 %819
        %821 = vrot.lane.b32.xlu0 %v647, 8
        %v822 = vpop.permute.xlu0 %821
        %823 = vrot.lane.b32.xlu0 %v649, 8
        %v824 = vpop.permute.xlu0 %823
        %825 = vrot.lane.b32.xlu0 %v652, 8
        %v826 = vpop.permute.xlu0 %825
        %827 = vrot.lane.b32.xlu0 %v654, 8
        %v828 = vpop.permute.xlu0 %827
        %829 = vrot.lane.b32.xlu0 %v657, 8
        %v830 = vpop.permute.xlu0 %829
        %831 = vrot.lane.b32.xlu0 %v659, 8
        %v832 = vpop.permute.xlu0 %831
        %833 = vrot.lane.b32.xlu0 %v662, 8
        %v834 = vpop.permute.xlu0 %833
        %835 = vrot.lane.b32.xlu0 %v664, 8
        %v836 = vpop.permute.xlu0 %835
        %837 = vrot.lane.b32.xlu0 %v667, 8
        %v838 = vpop.permute.xlu0 %837
        %839 = vrot.lane.b32.xlu0 %v669, 8
        %v840 = vpop.permute.xlu0 %839
        %873 = vrot.lane.b32.xlu0 %v673, 16
        %v874 = vpop.permute.xlu0 %873
        %875 = vrot.lane.b32.xlu0 %v675, 16
        %v876 = vpop.permute.xlu0 %875
        %877 = vrot.lane.b32.xlu0 %v678, 16
        %v878 = vpop.permute.xlu0 %877
        %879 = vrot.lane.b32.xlu0 %v680, 16
        %v880 = vpop.permute.xlu0 %879
        %881 = vrot.lane.b32.xlu0 %v683, 16
        %v882 = vpop.permute.xlu0 %881
        %883 = vrot.lane.b32.xlu0 %v685, 16
        %v884 = vpop.permute.xlu0 %883
        %885 = vrot.lane.b32.xlu0 %v688, 16
        %v886 = vpop.permute.xlu0 %885
        %887 = vrot.lane.b32.xlu0 %v690, 16
        %v888 = vpop.permute.xlu0 %887
        %889 = vrot.lane.b32.xlu0 %v693, 16
        %v890 = vpop.permute.xlu0 %889
        %891 = vrot.lane.b32.xlu0 %v695, 16
        %v892 = vpop.permute.xlu0 %891
        %893 = vrot.lane.b32.xlu0 %v698, 16
        %v894 = vpop.permute.xlu0 %893
        %895 = vrot.lane.b32.xlu0 %v700, 16
        %v896 = vpop.permute.xlu0 %895
        %897 = vrot.lane.b32.xlu0 %v703, 16
        %v898 = vpop.permute.xlu0 %897
        %899 = vrot.lane.b32.xlu0 %v705, 16
        %v900 = vpop.permute.xlu0 %899
        %901 = vrot.lane.b32.xlu0 %v708, 16
        %v902 = vpop.permute.xlu0 %901
        %903 = vrot.lane.b32.xlu0 %v710, 16
        %v904 = vpop.permute.xlu0 %903
        %905 = vrot.lane.b32.xlu0 %v713, 16
        %v906 = vpop.permute.xlu0 %905
        %907 = vrot.lane.b32.xlu0 %v715, 16
        %v908 = vpop.permute.xlu0 %907
        %909 = vrot.lane.b32.xlu0 %v718, 16
        %v910 = vpop.permute.xlu0 %909
        %911 = vrot.lane.b32.xlu0 %v720, 16
        %v912 = vpop.permute.xlu0 %911
        %913 = vrot.lane.b32.xlu0 %v723, 16
        %v914 = vpop.permute.xlu0 %913
        %915 = vrot.lane.b32.xlu0 %v725, 16
        %v916 = vpop.permute.xlu0 %915
        %917 = vrot.lane.b32.xlu0 %v728, 16
        %v918 = vpop.permute.xlu0 %917
        %919 = vrot.lane.b32.xlu0 %v730, 16
        %v920 = vpop.permute.xlu0 %919
        %921 = vrot.lane.b32.xlu0 %v733, 16
        %v922 = vpop.permute.xlu0 %921
        %923 = vrot.lane.b32.xlu0 %v735, 16
        %v924 = vpop.permute.xlu0 %923
        %925 = vrot.lane.b32.xlu0 %v738, 16
        %v926 = vpop.permute.xlu0 %925
        %927 = vrot.lane.b32.xlu0 %v740, 16
        %v928 = vpop.permute.xlu0 %927
        %929 = vrot.lane.b32.xlu0 %v743, 16
        %v930 = vpop.permute.xlu0 %929
        %931 = vrot.lane.b32.xlu0 %v745, 16
        %v932 = vpop.permute.xlu0 %931
        %933 = vrot.lane.b32.xlu0 %v748, 16
        %v934 = vpop.permute.xlu0 %933
        %935 = vrot.lane.b32.xlu0 %v750, 16
        %v936 = vpop.permute.xlu0 %935
        %969 = vrot.lane.b32.xlu0 %v490, 24
        %v970 = vpop.permute.xlu0 %969
        %971 = vrot.lane.b32.xlu0 %v491, 24
        %v972 = vpop.permute.xlu0 %971
        %973 = vrot.lane.b32.xlu0 %v493, 24
        %v974 = vpop.permute.xlu0 %973
        %975 = vrot.lane.b32.xlu0 %v494, 24
        %v976 = vpop.permute.xlu0 %975
        %977 = vrot.lane.b32.xlu0 %v496, 24
        %v978 = vpop.permute.xlu0 %977
        %979 = vrot.lane.b32.xlu0 %v497, 24
        %v980 = vpop.permute.xlu0 %979
        %981 = vrot.lane.b32.xlu0 %v499, 24
        %v982 = vpop.permute.xlu0 %981
        %983 = vrot.lane.b32.xlu0 %v500, 24
        %v984 = vpop.permute.xlu0 %983
        %985 = vrot.lane.b32.xlu0 %v502, 24
        %v986 = vpop.permute.xlu0 %985
        %987 = vrot.lane.b32.xlu0 %v503, 24
        %v988 = vpop.permute.xlu0 %987
        %989 = vrot.lane.b32.xlu0 %v505, 24
        %v990 = vpop.permute.xlu0 %989
        %991 = vrot.lane.b32.xlu0 %v506, 24
        %v992 = vpop.permute.xlu0 %991
        %993 = vrot.lane.b32.xlu0 %v508, 24
        %v994 = vpop.permute.xlu0 %993
        %995 = vrot.lane.b32.xlu0 %v509, 24
        %v996 = vpop.permute.xlu0 %995
        %997 = vrot.lane.b32.xlu0 %v511, 24
        %v998 = vpop.permute.xlu0 %997
        %999 = vrot.lane.b32.xlu0 %v512, 24
        %v1000 = vpop.permute.xlu0 %999
        %1001 = vrot.lane.b32.xlu0 %v514, 24
        %v1002 = vpop.permute.xlu0 %1001
        %1003 = vrot.lane.b32.xlu0 %v515, 24
        %v1004 = vpop.permute.xlu0 %1003
        %1005 = vrot.lane.b32.xlu0 %v517, 24
        %v1006 = vpop.permute.xlu0 %1005
        %1007 = vrot.lane.b32.xlu0 %v518, 24
        %v1008 = vpop.permute.xlu0 %1007
        %1009 = vrot.lane.b32.xlu0 %v520, 24
        %v1010 = vpop.permute.xlu0 %1009
        %1011 = vrot.lane.b32.xlu0 %v521, 24
        %v1012 = vpop.permute.xlu0 %1011
        %1013 = vrot.lane.b32.xlu0 %v523, 24
        %v1014 = vpop.permute.xlu0 %1013
        %1015 = vrot.lane.b32.xlu0 %v524, 24
        %v1016 = vpop.permute.xlu0 %1015
        %1017 = vrot.lane.b32.xlu0 %v526, 24
        %v1018 = vpop.permute.xlu0 %1017
        %1019 = vrot.lane.b32.xlu0 %v527, 24
        %v1020 = vpop.permute.xlu0 %1019
        %1021 = vrot.lane.b32.xlu0 %v529, 24
        %v1022 = vpop.permute.xlu0 %1021
        %1023 = vrot.lane.b32.xlu0 %v530, 24
        %v1024 = vpop.permute.xlu0 %1023
        %1025 = vrot.lane.b32.xlu0 %v532, 24
        %v1026 = vpop.permute.xlu0 %1025
        %1027 = vrot.lane.b32.xlu0 %v533, 24
        %v1028 = vpop.permute.xlu0 %1027
        %1029 = vrot.lane.b32.xlu0 %v535, 24
        %v1030 = vpop.permute.xlu0 %1029
        %1031 = vrot.lane.b32.xlu0 %v536, 24
        %v1032 = vpop.permute.xlu0 %1031
        %1065 = vrot.lane.b32.xlu0 %v597, 32
        %v1066 = vpop.permute.xlu0 %1065
        %1067 = vrot.lane.b32.xlu0 %v599, 32
        %v1068 = vpop.permute.xlu0 %1067
        %1069 = vrot.lane.b32.xlu0 %v602, 32
        %v1070 = vpop.permute.xlu0 %1069
        %1071 = vrot.lane.b32.xlu0 %v604, 32
        %v1072 = vpop.permute.xlu0 %1071
        %1073 = vrot.lane.b32.xlu0 %v607, 32
        %v1074 = vpop.permute.xlu0 %1073
        %1075 = vrot.lane.b32.xlu0 %v609, 32
        %v1076 = vpop.permute.xlu0 %1075
        %1077 = vrot.lane.b32.xlu0 %v612, 32
        %v1078 = vpop.permute.xlu0 %1077
        %1079 = vrot.lane.b32.xlu0 %v614, 32
        %v1080 = vpop.permute.xlu0 %1079
        %1081 = vrot.lane.b32.xlu0 %v617, 32
        %v1082 = vpop.permute.xlu0 %1081
        %1083 = vrot.lane.b32.xlu0 %v619, 32
        %v1084 = vpop.permute.xlu0 %1083
        %1085 = vrot.lane.b32.xlu0 %v622, 32
        %v1086 = vpop.permute.xlu0 %1085
        %1087 = vrot.lane.b32.xlu0 %v624, 32
        %v1088 = vpop.permute.xlu0 %1087
        %1089 = vrot.lane.b32.xlu0 %v627, 32
        %v1090 = vpop.permute.xlu0 %1089
        %1091 = vrot.lane.b32.xlu0 %v629, 32
        %v1092 = vpop.permute.xlu0 %1091
        %1093 = vrot.lane.b32.xlu0 %v632, 32
        %v1094 = vpop.permute.xlu0 %1093
        %1095 = vrot.lane.b32.xlu0 %v634, 32
        %v1096 = vpop.permute.xlu0 %1095
        %1097 = vrot.lane.b32.xlu0 %v637, 32
        %v1098 = vpop.permute.xlu0 %1097
        %1099 = vrot.lane.b32.xlu0 %v639, 32
        %v1100 = vpop.permute.xlu0 %1099
        %1101 = vrot.lane.b32.xlu0 %v642, 32
        %v1102 = vpop.permute.xlu0 %1101
        %1103 = vrot.lane.b32.xlu0 %v644, 32
        %v1104 = vpop.permute.xlu0 %1103
        %1105 = vrot.lane.b32.xlu0 %v647, 32
        %v1106 = vpop.permute.xlu0 %1105
        %1107 = vrot.lane.b32.xlu0 %v649, 32
        %v1108 = vpop.permute.xlu0 %1107
        %1109 = vrot.lane.b32.xlu0 %v652, 32
        %v1110 = vpop.permute.xlu0 %1109
        %1111 = vrot.lane.b32.xlu0 %v654, 32
        %v1112 = vpop.permute.xlu0 %1111
        %1113 = vrot.lane.b32.xlu0 %v657, 32
        %v1114 = vpop.permute.xlu0 %1113
        %1115 = vrot.lane.b32.xlu0 %v659, 32
        %v1116 = vpop.permute.xlu0 %1115
        %1117 = vrot.lane.b32.xlu0 %v662, 32
        %v1118 = vpop.permute.xlu0 %1117
        %1119 = vrot.lane.b32.xlu0 %v664, 32
        %v1120 = vpop.permute.xlu0 %1119
        %1121 = vrot.lane.b32.xlu0 %v667, 32
        %v1122 = vpop.permute.xlu0 %1121
        %1123 = vrot.lane.b32.xlu0 %v669, 32
        %v1124 = vpop.permute.xlu0 %1123
        %1125 = vrot.lane.b32.xlu0 %v756, 32
        %v1126 = vpop.permute.xlu0 %1125
        %1127 = vrot.lane.b32.xlu0 %v758, 32
        %v1128 = vpop.permute.xlu0 %1127
        %1161 = vrot.lane.b32.xlu0 %v678, 40
        %v1162 = vpop.permute.xlu0 %1161
        %1163 = vrot.lane.b32.xlu0 %v680, 40
        %v1164 = vpop.permute.xlu0 %1163
        %1165 = vrot.lane.b32.xlu0 %v683, 40
        %v1166 = vpop.permute.xlu0 %1165
        %1167 = vrot.lane.b32.xlu0 %v685, 40
        %v1168 = vpop.permute.xlu0 %1167
        %1169 = vrot.lane.b32.xlu0 %v688, 40
        %v1170 = vpop.permute.xlu0 %1169
        %1171 = vrot.lane.b32.xlu0 %v690, 40
        %v1172 = vpop.permute.xlu0 %1171
        %1173 = vrot.lane.b32.xlu0 %v693, 40
        %v1174 = vpop.permute.xlu0 %1173
        %1175 = vrot.lane.b32.xlu0 %v695, 40
        %v1176 = vpop.permute.xlu0 %1175
        %1177 = vrot.lane.b32.xlu0 %v698, 40
        %v1178 = vpop.permute.xlu0 %1177
        %1179 = vrot.lane.b32.xlu0 %v700, 40
        %v1180 = vpop.permute.xlu0 %1179
        %1181 = vrot.lane.b32.xlu0 %v703, 40
        %v1182 = vpop.permute.xlu0 %1181
        %1183 = vrot.lane.b32.xlu0 %v705, 40
        %v1184 = vpop.permute.xlu0 %1183
        %1185 = vrot.lane.b32.xlu0 %v708, 40
        %v1186 = vpop.permute.xlu0 %1185
        %1187 = vrot.lane.b32.xlu0 %v710, 40
        %v1188 = vpop.permute.xlu0 %1187
        %1189 = vrot.lane.b32.xlu0 %v713, 40
        %v1190 = vpop.permute.xlu0 %1189
        %1191 = vrot.lane.b32.xlu0 %v715, 40
        %v1192 = vpop.permute.xlu0 %1191
        %1193 = vrot.lane.b32.xlu0 %v718, 40
        %v1194 = vpop.permute.xlu0 %1193
        %1195 = vrot.lane.b32.xlu0 %v720, 40
        %v1196 = vpop.permute.xlu0 %1195
        %1197 = vrot.lane.b32.xlu0 %v723, 40
        %v1198 = vpop.permute.xlu0 %1197
        %1199 = vrot.lane.b32.xlu0 %v725, 40
        %v1200 = vpop.permute.xlu0 %1199
        %1201 = vrot.lane.b32.xlu0 %v728, 40
        %v1202 = vpop.permute.xlu0 %1201
        %1203 = vrot.lane.b32.xlu0 %v730, 40
        %v1204 = vpop.permute.xlu0 %1203
        %1205 = vrot.lane.b32.xlu0 %v733, 40
        %v1206 = vpop.permute.xlu0 %1205
        %1207 = vrot.lane.b32.xlu0 %v735, 40
        %v1208 = vpop.permute.xlu0 %1207
        %1209 = vrot.lane.b32.xlu0 %v738, 40
        %v1210 = vpop.permute.xlu0 %1209
        %1211 = vrot.lane.b32.xlu0 %v740, 40
        %v1212 = vpop.permute.xlu0 %1211
        %1213 = vrot.lane.b32.xlu0 %v743, 40
        %v1214 = vpop.permute.xlu0 %1213
        %1215 = vrot.lane.b32.xlu0 %v745, 40
        %v1216 = vpop.permute.xlu0 %1215
        %1217 = vrot.lane.b32.xlu0 %v748, 40
        %v1218 = vpop.permute.xlu0 %1217
        %1219 = vrot.lane.b32.xlu0 %v750, 40
        %v1220 = vpop.permute.xlu0 %1219
        %1221 = vrot.lane.b32.xlu0 %v761, 40
        %v1222 = vpop.permute.xlu0 %1221
        %1223 = vrot.lane.b32.xlu0 %v763, 40
        %v1224 = vpop.permute.xlu0 %1223
        %1257 = vrot.lane.b32.xlu0 %v493, 48
        %v1258 = vpop.permute.xlu0 %1257
        %1259 = vrot.lane.b32.xlu0 %v494, 48
        %v1260 = vpop.permute.xlu0 %1259
        %1261 = vrot.lane.b32.xlu0 %v496, 48
        %v1262 = vpop.permute.xlu0 %1261
        %1263 = vrot.lane.b32.xlu0 %v497, 48
        %v1264 = vpop.permute.xlu0 %1263
        %1265 = vrot.lane.b32.xlu0 %v499, 48
        %v1266 = vpop.permute.xlu0 %1265
        %1267 = vrot.lane.b32.xlu0 %v500, 48
        %v1268 = vpop.permute.xlu0 %1267
        %1269 = vrot.lane.b32.xlu0 %v502, 48
        %v1270 = vpop.permute.xlu0 %1269
        %1271 = vrot.lane.b32.xlu0 %v503, 48
        %v1272 = vpop.permute.xlu0 %1271
        %1273 = vrot.lane.b32.xlu0 %v505, 48
        %v1274 = vpop.permute.xlu0 %1273
        %1275 = vrot.lane.b32.xlu0 %v506, 48
        %v1276 = vpop.permute.xlu0 %1275
        %1277 = vrot.lane.b32.xlu0 %v508, 48
        %v1278 = vpop.permute.xlu0 %1277
        %1279 = vrot.lane.b32.xlu0 %v509, 48
        %v1280 = vpop.permute.xlu0 %1279
        %1281 = vrot.lane.b32.xlu0 %v511, 48
        %v1282 = vpop.permute.xlu0 %1281
        %1283 = vrot.lane.b32.xlu0 %v512, 48
        %v1284 = vpop.permute.xlu0 %1283
        %1285 = vrot.lane.b32.xlu0 %v514, 48
        %v1286 = vpop.permute.xlu0 %1285
        %1287 = vrot.lane.b32.xlu0 %v515, 48
        %v1288 = vpop.permute.xlu0 %1287
        %1289 = vrot.lane.b32.xlu0 %v517, 48
        %v1290 = vpop.permute.xlu0 %1289
        %1291 = vrot.lane.b32.xlu0 %v518, 48
        %v1292 = vpop.permute.xlu0 %1291
        %1293 = vrot.lane.b32.xlu0 %v520, 48
        %v1294 = vpop.permute.xlu0 %1293
        %1295 = vrot.lane.b32.xlu0 %v521, 48
        %v1296 = vpop.permute.xlu0 %1295
        %1297 = vrot.lane.b32.xlu0 %v523, 48
        %v1298 = vpop.permute.xlu0 %1297
        %1299 = vrot.lane.b32.xlu0 %v524, 48
        %v1300 = vpop.permute.xlu0 %1299
        %1301 = vrot.lane.b32.xlu0 %v526, 48
        %v1302 = vpop.permute.xlu0 %1301
        %1303 = vrot.lane.b32.xlu0 %v527, 48
        %v1304 = vpop.permute.xlu0 %1303
        %1305 = vrot.lane.b32.xlu0 %v529, 48
        %v1306 = vpop.permute.xlu0 %1305
        %1307 = vrot.lane.b32.xlu0 %v530, 48
        %v1308 = vpop.permute.xlu0 %1307
        %1309 = vrot.lane.b32.xlu0 %v532, 48
        %v1310 = vpop.permute.xlu0 %1309
        %1311 = vrot.lane.b32.xlu0 %v533, 48
        %v1312 = vpop.permute.xlu0 %1311
        %1313 = vrot.lane.b32.xlu0 %v535, 48
        %v1314 = vpop.permute.xlu0 %1313
        %1315 = vrot.lane.b32.xlu0 %v536, 48
        %v1316 = vpop.permute.xlu0 %1315
        %1317 = vrot.lane.b32.xlu0 %v538, 48
        %v1318 = vpop.permute.xlu0 %1317
        %1319 = vrot.lane.b32.xlu0 %v539, 48
        %v1320 = vpop.permute.xlu0 %1319
        %1353 = vrot.lane.b32.xlu0 %v602, 56
        %v1354 = vpop.permute.xlu0 %1353
        %1355 = vrot.lane.b32.xlu0 %v604, 56
        %v1356 = vpop.permute.xlu0 %1355
        %1357 = vrot.lane.b32.xlu0 %v607, 56
        %v1358 = vpop.permute.xlu0 %1357
        %1359 = vrot.lane.b32.xlu0 %v609, 56
        %v1360 = vpop.permute.xlu0 %1359
        %1361 = vrot.lane.b32.xlu0 %v612, 56
        %v1362 = vpop.permute.xlu0 %1361
        %1363 = vrot.lane.b32.xlu0 %v614, 56
        %v1364 = vpop.permute.xlu0 %1363
        %1365 = vrot.lane.b32.xlu0 %v617, 56
        %v1366 = vpop.permute.xlu0 %1365
        %1367 = vrot.lane.b32.xlu0 %v619, 56
        %v1368 = vpop.permute.xlu0 %1367
        %1369 = vrot.lane.b32.xlu0 %v622, 56
        %v1370 = vpop.permute.xlu0 %1369
        %1371 = vrot.lane.b32.xlu0 %v624, 56
        %v1372 = vpop.permute.xlu0 %1371
        %1373 = vrot.lane.b32.xlu0 %v627, 56
        %v1374 = vpop.permute.xlu0 %1373
        %1375 = vrot.lane.b32.xlu0 %v629, 56
        %v1376 = vpop.permute.xlu0 %1375
        %1377 = vrot.lane.b32.xlu0 %v632, 56
        %v1378 = vpop.permute.xlu0 %1377
        %1379 = vrot.lane.b32.xlu0 %v634, 56
        %v1380 = vpop.permute.xlu0 %1379
        %1381 = vrot.lane.b32.xlu0 %v637, 56
        %v1382 = vpop.permute.xlu0 %1381
        %1383 = vrot.lane.b32.xlu0 %v639, 56
        %v1384 = vpop.permute.xlu0 %1383
        %1385 = vrot.lane.b32.xlu0 %v642, 56
        %v1386 = vpop.permute.xlu0 %1385
        %1387 = vrot.lane.b32.xlu0 %v644, 56
        %v1388 = vpop.permute.xlu0 %1387
        %1389 = vrot.lane.b32.xlu0 %v647, 56
        %v1390 = vpop.permute.xlu0 %1389
        %1391 = vrot.lane.b32.xlu0 %v649, 56
        %v1392 = vpop.permute.xlu0 %1391
        %1393 = vrot.lane.b32.xlu0 %v652, 56
        %v1394 = vpop.permute.xlu0 %1393
        %1395 = vrot.lane.b32.xlu0 %v654, 56
        %v1396 = vpop.permute.xlu0 %1395
        %1397 = vrot.lane.b32.xlu0 %v657, 56
        %v1398 = vpop.permute.xlu0 %1397
        %1399 = vrot.lane.b32.xlu0 %v659, 56
        %v1400 = vpop.permute.xlu0 %1399
        %1401 = vrot.lane.b32.xlu0 %v662, 56
        %v1402 = vpop.permute.xlu0 %1401
        %1403 = vrot.lane.b32.xlu0 %v664, 56
        %v1404 = vpop.permute.xlu0 %1403
        %1405 = vrot.lane.b32.xlu0 %v667, 56
        %v1406 = vpop.permute.xlu0 %1405
        %1407 = vrot.lane.b32.xlu0 %v669, 56
        %v1408 = vpop.permute.xlu0 %1407
        %1409 = vrot.lane.b32.xlu0 %v756, 56
        %v1410 = vpop.permute.xlu0 %1409
        %1411 = vrot.lane.b32.xlu0 %v758, 56
        %v1412 = vpop.permute.xlu0 %1411
        %1413 = vrot.lane.b32.xlu0 %v769, 56
        %v1414 = vpop.permute.xlu0 %1413
        %1415 = vrot.lane.b32.xlu0 %v771, 56
        %v1416 = vpop.permute.xlu0 %1415
        %1449 = vrot.lane.b32.xlu0 %v683, 64
        %v1450 = vpop.permute.xlu0 %1449
        %1451 = vrot.lane.b32.xlu0 %v685, 64
        %v1452 = vpop.permute.xlu0 %1451
        %1453 = vrot.lane.b32.xlu0 %v688, 64
        %v1454 = vpop.permute.xlu0 %1453
        %1455 = vrot.lane.b32.xlu0 %v690, 64
        %v1456 = vpop.permute.xlu0 %1455
        %1457 = vrot.lane.b32.xlu0 %v693, 64
        %v1458 = vpop.permute.xlu0 %1457
        %1459 = vrot.lane.b32.xlu0 %v695, 64
        %v1460 = vpop.permute.xlu0 %1459
        %1461 = vrot.lane.b32.xlu0 %v698, 64
        %v1462 = vpop.permute.xlu0 %1461
        %1463 = vrot.lane.b32.xlu0 %v700, 64
        %v1464 = vpop.permute.xlu0 %1463
        %1465 = vrot.lane.b32.xlu0 %v703, 64
        %v1466 = vpop.permute.xlu0 %1465
        %1467 = vrot.lane.b32.xlu0 %v705, 64
        %v1468 = vpop.permute.xlu0 %1467
        %1469 = vrot.lane.b32.xlu0 %v708, 64
        %v1470 = vpop.permute.xlu0 %1469
        %1471 = vrot.lane.b32.xlu0 %v710, 64
        %v1472 = vpop.permute.xlu0 %1471
        %1473 = vrot.lane.b32.xlu0 %v713, 64
        %v1474 = vpop.permute.xlu0 %1473
        %1475 = vrot.lane.b32.xlu0 %v715, 64
        %v1476 = vpop.permute.xlu0 %1475
        %1477 = vrot.lane.b32.xlu0 %v718, 64
        %v1478 = vpop.permute.xlu0 %1477
        %1479 = vrot.lane.b32.xlu0 %v720, 64
        %v1480 = vpop.permute.xlu0 %1479
        %1481 = vrot.lane.b32.xlu0 %v723, 64
        %v1482 = vpop.permute.xlu0 %1481
        %1483 = vrot.lane.b32.xlu0 %v725, 64
        %v1484 = vpop.permute.xlu0 %1483
        %1485 = vrot.lane.b32.xlu0 %v728, 64
        %v1486 = vpop.permute.xlu0 %1485
        %1487 = vrot.lane.b32.xlu0 %v730, 64
        %v1488 = vpop.permute.xlu0 %1487
        %1489 = vrot.lane.b32.xlu0 %v733, 64
        %v1490 = vpop.permute.xlu0 %1489
        %1491 = vrot.lane.b32.xlu0 %v735, 64
        %v1492 = vpop.permute.xlu0 %1491
        %1493 = vrot.lane.b32.xlu0 %v738, 64
        %v1494 = vpop.permute.xlu0 %1493
        %1495 = vrot.lane.b32.xlu0 %v740, 64
        %v1496 = vpop.permute.xlu0 %1495
        %1497 = vrot.lane.b32.xlu0 %v743, 64
        %v1498 = vpop.permute.xlu0 %1497
        %1499 = vrot.lane.b32.xlu0 %v745, 64
        %v1500 = vpop.permute.xlu0 %1499
        %1501 = vrot.lane.b32.xlu0 %v748, 64
        %v1502 = vpop.permute.xlu0 %1501
        %1503 = vrot.lane.b32.xlu0 %v750, 64
        %v1504 = vpop.permute.xlu0 %1503
        %1505 = vrot.lane.b32.xlu0 %v761, 64
        %v1506 = vpop.permute.xlu0 %1505
        %1507 = vrot.lane.b32.xlu0 %v763, 64
        %v1508 = vpop.permute.xlu0 %1507
        %1509 = vrot.lane.b32.xlu0 %v774, 64
        %v1510 = vpop.permute.xlu0 %1509
        %1511 = vrot.lane.b32.xlu0 %v776, 64
        %v1512 = vpop.permute.xlu0 %1511
        %vm1545 = vcmask 64512
        %v1546 = vsel %vm1545, %v487, %v778
        %v1547 = vsel %vm1545, %v488, %v780
        %v1548 = vsel %vm1545, %v490, %v782
        %v1549 = vsel %vm1545, %v491, %v784
        %v1550 = vsel %vm1545, %v493, %v786
        %v1551 = vsel %vm1545, %v494, %v788
        %v1552 = vsel %vm1545, %v496, %v790
        %v1553 = vsel %vm1545, %v497, %v792
        %v1554 = vsel %vm1545, %v499, %v794
        %v1555 = vsel %vm1545, %v500, %v796
        %v1556 = vsel %vm1545, %v502, %v798
        %v1557 = vsel %vm1545, %v503, %v800
        %v1558 = vsel %vm1545, %v505, %v802
        %v1559 = vsel %vm1545, %v506, %v804
        %v1560 = vsel %vm1545, %v508, %v806
        %v1561 = vsel %vm1545, %v509, %v808
        %v1562 = vsel %vm1545, %v511, %v810
        %v1563 = vsel %vm1545, %v512, %v812
        %v1564 = vsel %vm1545, %v514, %v814
        %v1565 = vsel %vm1545, %v515, %v816
        %v1566 = vsel %vm1545, %v517, %v818
        %v1567 = vsel %vm1545, %v518, %v820
        %v1568 = vsel %vm1545, %v520, %v822
        %v1569 = vsel %vm1545, %v521, %v824
        %v1570 = vsel %vm1545, %v523, %v826
        %v1571 = vsel %vm1545, %v524, %v828
        %v1572 = vsel %vm1545, %v526, %v830
        %v1573 = vsel %vm1545, %v527, %v832
        %v1574 = vsel %vm1545, %v529, %v834
        %v1575 = vsel %vm1545, %v530, %v836
        %v1576 = vsel %vm1545, %v532, %v838
        %v1577 = vsel %vm1545, %v533, %v840
        %vm1578 = vcmask 130048
        %v1579 = vsel %vm1578, %v1546, %v874
        %v1580 = vsel %vm1578, %v1547, %v876
        %v1581 = vsel %vm1578, %v1548, %v878
        %v1582 = vsel %vm1578, %v1549, %v880
        %v1583 = vsel %vm1578, %v1550, %v882
        %v1584 = vsel %vm1578, %v1551, %v884
        %v1585 = vsel %vm1578, %v1552, %v886
        %v1586 = vsel %vm1578, %v1553, %v888
        %v1587 = vsel %vm1578, %v1554, %v890
        %v1588 = vsel %vm1578, %v1555, %v892
        %v1589 = vsel %vm1578, %v1556, %v894
        %v1590 = vsel %vm1578, %v1557, %v896
        %v1591 = vsel %vm1578, %v1558, %v898
        %v1592 = vsel %vm1578, %v1559, %v900
        %v1593 = vsel %vm1578, %v1560, %v902
        %v1594 = vsel %vm1578, %v1561, %v904
        %v1595 = vsel %vm1578, %v1562, %v906
        %v1596 = vsel %vm1578, %v1563, %v908
        %v1597 = vsel %vm1578, %v1564, %v910
        %v1598 = vsel %vm1578, %v1565, %v912
        %v1599 = vsel %vm1578, %v1566, %v914
        %v1600 = vsel %vm1578, %v1567, %v916
        %v1601 = vsel %vm1578, %v1568, %v918
        %v1602 = vsel %vm1578, %v1569, %v920
        %v1603 = vsel %vm1578, %v1570, %v922
        %v1604 = vsel %vm1578, %v1571, %v924
        %v1605 = vsel %vm1578, %v1572, %v926
        %v1606 = vsel %vm1578, %v1573, %v928
        %v1607 = vsel %vm1578, %v1574, %v930
        %v1608 = vsel %vm1578, %v1575, %v932
        %v1609 = vsel %vm1578, %v1576, %v934
        %v1610 = vsel %vm1578, %v1577, %v936
        %vm1611 = vcmask 195584
        %v1612 = vsel %vm1611, %v1579, %v970
        %v1613 = vsel %vm1611, %v1580, %v972
        %v1614 = vsel %vm1611, %v1581, %v974
        %v1615 = vsel %vm1611, %v1582, %v976
        %v1616 = vsel %vm1611, %v1583, %v978
        %v1617 = vsel %vm1611, %v1584, %v980
        %v1618 = vsel %vm1611, %v1585, %v982
        %v1619 = vsel %vm1611, %v1586, %v984
        %v1620 = vsel %vm1611, %v1587, %v986
        %v1621 = vsel %vm1611, %v1588, %v988
        %v1622 = vsel %vm1611, %v1589, %v990
        %v1623 = vsel %vm1611, %v1590, %v992
        %v1624 = vsel %vm1611, %v1591, %v994
        %v1625 = vsel %vm1611, %v1592, %v996
        %v1626 = vsel %vm1611, %v1593, %v998
        %v1627 = vsel %vm1611, %v1594, %v1000
        %v1628 = vsel %vm1611, %v1595, %v1002
        %v1629 = vsel %vm1611, %v1596, %v1004
        %v1630 = vsel %vm1611, %v1597, %v1006
        %v1631 = vsel %vm1611, %v1598, %v1008
        %v1632 = vsel %vm1611, %v1599, %v1010
        %v1633 = vsel %vm1611, %v1600, %v1012
        %v1634 = vsel %vm1611, %v1601, %v1014
        %v1635 = vsel %vm1611, %v1602, %v1016
        %v1636 = vsel %vm1611, %v1603, %v1018
        %v1637 = vsel %vm1611, %v1604, %v1020
        %v1638 = vsel %vm1611, %v1605, %v1022
        %v1639 = vsel %vm1611, %v1606, %v1024
        %v1640 = vsel %vm1611, %v1607, %v1026
        %v1641 = vsel %vm1611, %v1608, %v1028
        %v1642 = vsel %vm1611, %v1609, %v1030
        %v1643 = vsel %vm1611, %v1610, %v1032
        %vm1644 = vcmask 261120
        %v1645 = vsel %vm1644, %v1612, %v1066
        %v1646 = vsel %vm1644, %v1613, %v1068
        %v1647 = vsel %vm1644, %v1614, %v1070
        %v1648 = vsel %vm1644, %v1615, %v1072
        %v1649 = vsel %vm1644, %v1616, %v1074
        %v1650 = vsel %vm1644, %v1617, %v1076
        %v1651 = vsel %vm1644, %v1618, %v1078
        %v1652 = vsel %vm1644, %v1619, %v1080
        %v1653 = vsel %vm1644, %v1620, %v1082
        %v1654 = vsel %vm1644, %v1621, %v1084
        %v1655 = vsel %vm1644, %v1622, %v1086
        %v1656 = vsel %vm1644, %v1623, %v1088
        %v1657 = vsel %vm1644, %v1624, %v1090
        %v1658 = vsel %vm1644, %v1625, %v1092
        %v1659 = vsel %vm1644, %v1626, %v1094
        %v1660 = vsel %vm1644, %v1627, %v1096
        %v1661 = vsel %vm1644, %v1628, %v1098
        %v1662 = vsel %vm1644, %v1629, %v1100
        %v1663 = vsel %vm1644, %v1630, %v1102
        %v1664 = vsel %vm1644, %v1631, %v1104
        %v1665 = vsel %vm1644, %v1632, %v1106
        %v1666 = vsel %vm1644, %v1633, %v1108
        %v1667 = vsel %vm1644, %v1634, %v1110
        %v1668 = vsel %vm1644, %v1635, %v1112
        %v1669 = vsel %vm1644, %v1636, %v1114
        %v1670 = vsel %vm1644, %v1637, %v1116
        %v1671 = vsel %vm1644, %v1638, %v1118
        %v1672 = vsel %vm1644, %v1639, %v1120
        %v1673 = vsel %vm1644, %v1640, %v1122
        %v1674 = vsel %vm1644, %v1641, %v1124
        %v1675 = vsel %vm1644, %v1642, %v1126
        %v1676 = vsel %vm1644, %v1643, %v1128
        %vm1677 = vcmask 326656
        %v1678 = vsel %vm1677, %v1645, %v1162
        %v1679 = vsel %vm1677, %v1646, %v1164
        %v1680 = vsel %vm1677, %v1647, %v1166
        %v1681 = vsel %vm1677, %v1648, %v1168
        %v1682 = vsel %vm1677, %v1649, %v1170
        %v1683 = vsel %vm1677, %v1650, %v1172
        %v1684 = vsel %vm1677, %v1651, %v1174
        %v1685 = vsel %vm1677, %v1652, %v1176
        %v1686 = vsel %vm1677, %v1653, %v1178
        %v1687 = vsel %vm1677, %v1654, %v1180
        %v1688 = vsel %vm1677, %v1655, %v1182
        %v1689 = vsel %vm1677, %v1656, %v1184
        %v1690 = vsel %vm1677, %v1657, %v1186
        %v1691 = vsel %vm1677, %v1658, %v1188
        %v1692 = vsel %vm1677, %v1659, %v1190
        %v1693 = vsel %vm1677, %v1660, %v1192
        %v1694 = vsel %vm1677, %v1661, %v1194
        %v1695 = vsel %vm1677, %v1662, %v1196
        %v1696 = vsel %vm1677, %v1663, %v1198
        %v1697 = vsel %vm1677, %v1664, %v1200
        %v1698 = vsel %vm1677, %v1665, %v1202
        %v1699 = vsel %vm1677, %v1666, %v1204
        %v1700 = vsel %vm1677, %v1667, %v1206
        %v1701 = vsel %vm1677, %v1668, %v1208
        %v1702 = vsel %vm1677, %v1669, %v1210
        %v1703 = vsel %vm1677, %v1670, %v1212
        %v1704 = vsel %vm1677, %v1671, %v1214
        %v1705 = vsel %vm1677, %v1672, %v1216
        %v1706 = vsel %vm1677, %v1673, %v1218
        %v1707 = vsel %vm1677, %v1674, %v1220
        %v1708 = vsel %vm1677, %v1675, %v1222
        %v1709 = vsel %vm1677, %v1676, %v1224
        %vm1710 = vcmask 392192
        %v1711 = vsel %vm1710, %v1678, %v1258
        %v1712 = vsel %vm1710, %v1679, %v1260
        %v1713 = vsel %vm1710, %v1680, %v1262
        %v1714 = vsel %vm1710, %v1681, %v1264
        %v1715 = vsel %vm1710, %v1682, %v1266
        %v1716 = vsel %vm1710, %v1683, %v1268
        %v1717 = vsel %vm1710, %v1684, %v1270
        %v1718 = vsel %vm1710, %v1685, %v1272
        %v1719 = vsel %vm1710, %v1686, %v1274
        %v1720 = vsel %vm1710, %v1687, %v1276
        %v1721 = vsel %vm1710, %v1688, %v1278
        %v1722 = vsel %vm1710, %v1689, %v1280
        %v1723 = vsel %vm1710, %v1690, %v1282
        %v1724 = vsel %vm1710, %v1691, %v1284
        %v1725 = vsel %vm1710, %v1692, %v1286
        %v1726 = vsel %vm1710, %v1693, %v1288
        %v1727 = vsel %vm1710, %v1694, %v1290
        %v1728 = vsel %vm1710, %v1695, %v1292
        %v1729 = vsel %vm1710, %v1696, %v1294
        %v1730 = vsel %vm1710, %v1697, %v1296
        %v1731 = vsel %vm1710, %v1698, %v1298
        %v1732 = vsel %vm1710, %v1699, %v1300
        %v1733 = vsel %vm1710, %v1700, %v1302
        %v1734 = vsel %vm1710, %v1701, %v1304
        %v1735 = vsel %vm1710, %v1702, %v1306
        %v1736 = vsel %vm1710, %v1703, %v1308
        %v1737 = vsel %vm1710, %v1704, %v1310
        %v1738 = vsel %vm1710, %v1705, %v1312
        %v1739 = vsel %vm1710, %v1706, %v1314
        %v1740 = vsel %vm1710, %v1707, %v1316
        %v1741 = vsel %vm1710, %v1708, %v1318
        %v1742 = vsel %vm1710, %v1709, %v1320
        %vm1743 = vcmask 457728
        %v1744 = vsel %vm1743, %v1711, %v1354
        %v1745 = vsel %vm1743, %v1712, %v1356
        %v1746 = vsel %vm1743, %v1713, %v1358
        %v1747 = vsel %vm1743, %v1714, %v1360
        %v1748 = vsel %vm1743, %v1715, %v1362
        %v1749 = vsel %vm1743, %v1716, %v1364
        %v1750 = vsel %vm1743, %v1717, %v1366
        %v1751 = vsel %vm1743, %v1718, %v1368
        %v1752 = vsel %vm1743, %v1719, %v1370
        %v1753 = vsel %vm1743, %v1720, %v1372
        %v1754 = vsel %vm1743, %v1721, %v1374
        %v1755 = vsel %vm1743, %v1722, %v1376
        %v1756 = vsel %vm1743, %v1723, %v1378
        %v1757 = vsel %vm1743, %v1724, %v1380
        %v1758 = vsel %vm1743, %v1725, %v1382
        %v1759 = vsel %vm1743, %v1726, %v1384
        %v1760 = vsel %vm1743, %v1727, %v1386
        %v1761 = vsel %vm1743, %v1728, %v1388
        %v1762 = vsel %vm1743, %v1729, %v1390
        %v1763 = vsel %vm1743, %v1730, %v1392
        %v1764 = vsel %vm1743, %v1731, %v1394
        %v1765 = vsel %vm1743, %v1732, %v1396
        %v1766 = vsel %vm1743, %v1733, %v1398
        %v1767 = vsel %vm1743, %v1734, %v1400
        %v1768 = vsel %vm1743, %v1735, %v1402
        %v1769 = vsel %vm1743, %v1736, %v1404
        %v1770 = vsel %vm1743, %v1737, %v1406
        %v1771 = vsel %vm1743, %v1738, %v1408
        %v1772 = vsel %vm1743, %v1739, %v1410
        %v1773 = vsel %vm1743, %v1740, %v1412
        %v1774 = vsel %vm1743, %v1741, %v1414
        %v1775 = vsel %vm1743, %v1742, %v1416
        %vm1776 = vcmask 523264
        %v1777 = vsel %vm1776, %v1744, %v1450
        %v1778 = vsel %vm1776, %v1745, %v1452
        %v1779 = vsel %vm1776, %v1746, %v1454
        %v1780 = vsel %vm1776, %v1747, %v1456
        %v1781 = vsel %vm1776, %v1748, %v1458
        %v1782 = vsel %vm1776, %v1749, %v1460
        %v1783 = vsel %vm1776, %v1750, %v1462
        %v1784 = vsel %vm1776, %v1751, %v1464
        %v1785 = vsel %vm1776, %v1752, %v1466
        %v1786 = vsel %vm1776, %v1753, %v1468
        %v1787 = vsel %vm1776, %v1754, %v1470
        %v1788 = vsel %vm1776, %v1755, %v1472
        %v1789 = vsel %vm1776, %v1756, %v1474
        %v1790 = vsel %vm1776, %v1757, %v1476
        %v1791 = vsel %vm1776, %v1758, %v1478
        %v1792 = vsel %vm1776, %v1759, %v1480
        %v1793 = vsel %vm1776, %v1760, %v1482
        %v1794 = vsel %vm1776, %v1761, %v1484
        %v1795 = vsel %vm1776, %v1762, %v1486
        %v1796 = vsel %vm1776, %v1763, %v1488
        %v1797 = vsel %vm1776, %v1764, %v1490
        %v1798 = vsel %vm1776, %v1765, %v1492
        %v1799 = vsel %vm1776, %v1766, %v1494
        %v1800 = vsel %vm1776, %v1767, %v1496
        %v1801 = vsel %vm1776, %v1768, %v1498
        %v1802 = vsel %vm1776, %v1769, %v1500
        %v1803 = vsel %vm1776, %v1770, %v1502
        %v1804 = vsel %vm1776, %v1771, %v1504
        %v1805 = vsel %vm1776, %v1772, %v1506
        %v1806 = vsel %vm1776, %v1773, %v1508
        %v1807 = vsel %vm1776, %v1774, %v1510
        %v1808 = vsel %vm1776, %v1775, %v1512
        %v1809 = vld [vmem:[%s2] sm:$0xff]
        %v1810 = vld [vmem:[%s2 + $0x8] sm:$0xff]
        %v1811 = vld [vmem:[%s2 + $0x10] sm:$0xff]
        %v1812 = vld [vmem:[%s2 + $0x18] sm:$0xff]
        %v1813 = vld [vmem:[%s2 + $0x20] sm:$0xff]
        %v1814 = vld [vmem:[%s2 + $0x28] sm:$0xff]
        %v1815 = vld [vmem:[%s2 + $0x30] sm:$0xff]
        %v1816 = vld [vmem:[%s2 + $0x38] sm:$0xff]
        %v1817 = vld [vmem:[%s2 + $0x40] sm:$0xff]
        %vm1818 = vcmask 588800
        %v1820 = vsel %vm1818, %v1777, 0
        %v1823 = vsel %vm1818, %v1778, 0
        %v1826 = vsel %vm1818, %v1779, 0
        %v1829 = vsel %vm1818, %v1780, 0
        %v1832 = vsel %vm1818, %v1781, 0
        %v1835 = vsel %vm1818, %v1782, 0
        %v1838 = vsel %vm1818, %v1783, 0
        %v1841 = vsel %vm1818, %v1784, 0
        %v1844 = vsel %vm1818, %v1785, 0
        %v1847 = vsel %vm1818, %v1786, 0
        %v1850 = vsel %vm1818, %v1787, 0
        %v1853 = vsel %vm1818, %v1788, 0
        %v1856 = vsel %vm1818, %v1789, 0
        %v1859 = vsel %vm1818, %v1790, 0
        %v1862 = vsel %vm1818, %v1791, 0
        %v1865 = vsel %vm1818, %v1792, 0
        %v1868 = vsel %vm1818, %v1793, 0
        %v1871 = vsel %vm1818, %v1794, 0
        %v1874 = vsel %vm1818, %v1795, 0
        %v1877 = vsel %vm1818, %v1796, 0
        %v1880 = vsel %vm1818, %v1797, 0
        %v1883 = vsel %vm1818, %v1798, 0
        %v1886 = vsel %vm1818, %v1799, 0
        %v1889 = vsel %vm1818, %v1800, 0
        %v1892 = vsel %vm1818, %v1801, 0
        %v1895 = vsel %vm1818, %v1802, 0
        %v1898 = vsel %vm1818, %v1803, 0
        %v1901 = vsel %vm1818, %v1804, 0
        %v1904 = vsel %vm1818, %v1805, 0
        %v1907 = vsel %vm1818, %v1806, 0
        %v1910 = vsel %vm1818, %v1807, 0
        %v1913 = vsel %vm1818, %v1808, 0
        %1915 = vmatprep.subr.mxu0 0.0
        %1916 = vmatpush1.msra.mxu0 %v1809
        %1917 = vmatprep.subr.mxu0 0.0
        %1918 = vmatpush1.msra.mxu0 %v1810
        %1919 = vmatprep.subr.mxu0 0.0
        %1920 = vmatpush1.msra.mxu0 %v1811
        %1921 = vmatprep.subr.mxu0 0.0
        %1922 = vmatpush1.msra.mxu0 %v1812
        %1923 = vmatprep.subr.mxu0 0.0
        %1924 = vmatpush1.msra.mxu0 %v1813
        %1925 = vmatprep.subr.mxu0 0.0
        %1926 = vmatpush1.msra.mxu0 %v1814
        %1927 = vmatprep.subr.mxu0 0.0
        %1928 = vmatpush1.msra.mxu0 %v1815
        %1929 = vmatprep.subr.mxu0 0.0
        %1930 = vmatpush1.msra.mxu0 %v1816
        %1931 = vmatprep.subr.mxu0 0.0
        %1932 = vmatpush1.msra.mxu0 %v1817
        %1933 = vmatprep.subr.mxu0 0.0
        %1934 = vmatpush1.msra.mxu0 0.0
        %1935 = vmatprep.subr.mxu0 0.0
        %1936 = vmatpush1.msra.mxu0 0.0
        %1937 = vmatprep.subr.mxu0 0.0
        %1938 = vmatpush1.msra.mxu0 0.0
        %1939 = vmatprep.subr.mxu0 0.0
        %1940 = vmatpush1.msra.mxu0 0.0
        %1941 = vmatprep.subr.mxu0 0.0
        %1942 = vmatpush1.msra.mxu0 0.0
        %1943 = vmatprep.subr.mxu0 0.0
        %1944 = vmatpush1.msra.mxu0 0.0
        %1945 = vmatprep.subr.mxu0 0.0
        %1946 = vmatpush1.msra.mxu0 0.0
        %1947 = vmatprep.subr.mxu0 0.0
        %1948 = vmatpush1.msra.mxu0 0.0
        %1949 = vmatprep.subr.mxu0 0.0
        %1950 = vmatpush1.msra.mxu0 0.0
        %1951 = vmatprep.subr.mxu0 0.0
        %1952 = vmatpush1.msra.mxu0 0.0
        %1953 = vmatprep.subr.mxu0 0.0
        %1954 = vmatpush1.msra.mxu0 0.0
        %1955 = vmatprep.subr.mxu0 0.0
        %1956 = vmatpush1.msra.mxu0 0.0
        %1957 = vmatprep.subr.mxu0 0.0
        %1958 = vmatpush1.msra.mxu0 0.0
        %1959 = vmatprep.subr.mxu0 0.0
        %1960 = vmatpush1.msra.mxu0 0.0
        %1961 = vmatprep.subr.mxu0 0.0
        %1962 = vmatpush1.msra.mxu0 0.0
        %1963 = vmatprep.subr.mxu0 0.0
        %1964 = vmatpush1.msra.mxu0 0.0
        %1965 = vmatprep.subr.mxu0 0.0
        %1966 = vmatpush1.msra.mxu0 0.0
        %1967 = vmatprep.subr.mxu0 0.0
        %1968 = vmatpush1.msra.mxu0 0.0
        %1969 = vmatprep.subr.mxu0 0.0
        %1970 = vmatpush1.msra.mxu0 0.0
        %1971 = vmatprep.subr.mxu0 0.0
        %1972 = vmatpush1.msra.mxu0 0.0
        %1973 = vmatprep.subr.mxu0 0.0
        %1974 = vmatpush1.msra.mxu0 0.0
        %1975 = vmatprep.subr.mxu0 0.0
        %1976 = vmatpush1.msra.mxu0 0.0
        %1977 = vmatprep.subr.mxu0 0.0
        %1978 = vmatpush1.msra.mxu0 0.0
        %1979 = vmatprep.mubr.f32.mxu0 0.0
        %1980 = vmatmul.mubr.f32.gmra.mrb[0].mxu0 %v1820
        %v1981 = vpop.f32.mrb[0].mxu0
        %v1982 = vadd.f32 0.0, %v1981
        %v1983 = vpop.f32.mrb[0].mxu0
        %1984 = vmatprep.mubr.f32.mxu0 0.0
        %1985 = vmatmul.mubr.f32.gmra.mrb[0].mxu0 %v1823
        %v1986 = vpop.f32.mrb[0].mxu0
        %v1987 = vadd.f32 0.0, %v1986
        %v1988 = vpop.f32.mrb[0].mxu0
        %1989 = vmatprep.mubr.f32.mxu0 0.0
        %1990 = vmatmul.mubr.f32.gmra.mrb[0].mxu0 %v1826
        %v1991 = vpop.f32.mrb[0].mxu0
        %v1992 = vadd.f32 0.0, %v1991
        %v1993 = vpop.f32.mrb[0].mxu0
        %1994 = vmatprep.mubr.f32.mxu0 0.0
        %1995 = vmatmul.mubr.f32.gmra.mrb[0].mxu0 %v1829
        %v1996 = vpop.f32.mrb[0].mxu0
        %v1997 = vadd.f32 0.0, %v1996
        %v1998 = vpop.f32.mrb[0].mxu0
        %1999 = vmatprep.mubr.f32.mxu0 0.0
        %2000 = vmatmul.mubr.f32.gmra.mrb[0].mxu0 %v1832
        %v2001 = vpop.f32.mrb[0].mxu0
        %v2002 = vadd.f32 0.0, %v2001
        %v2003 = vpop.f32.mrb[0].mxu0
        %2004 = vmatprep.mubr.f32.mxu0 0.0
        %2005 = vmatmul.mubr.f32.gmra.mrb[0].mxu0 %v1835
        %v2006 = vpop.f32.mrb[0].mxu0
        %v2007 = vadd.f32 0.0, %v2006
        %v2008 = vpop.f32.mrb[0].mxu0
        %2009 = vmatprep.mubr.f32.mxu0 0.0
        %2010 = vmatmul.mubr.f32.gmra.mrb[0].mxu0 %v1838
        %v2011 = vpop.f32.mrb[0].mxu0
        %v2012 = vadd.f32 0.0, %v2011
        %v2013 = vpop.f32.mrb[0].mxu0
        %2014 = vmatprep.mubr.f32.mxu0 0.0
        %2015 = vmatmul.mubr.f32.gmra.mrb[0].mxu0 %v1841
        %v2016 = vpop.f32.mrb[0].mxu0
        %v2017 = vadd.f32 0.0, %v2016
        %v2018 = vpop.f32.mrb[0].mxu0
        %2019 = vmatprep.mubr.f32.mxu0 0.0
        %2020 = vmatmul.mubr.f32.gmra.mrb[0].mxu0 %v1844
        %v2021 = vpop.f32.mrb[0].mxu0
        %v2022 = vadd.f32 0.0, %v2021
        %v2023 = vpop.f32.mrb[0].mxu0
        %2024 = vmatprep.mubr.f32.mxu0 0.0
        %2025 = vmatmul.mubr.f32.gmra.mrb[0].mxu0 %v1847
        %v2026 = vpop.f32.mrb[0].mxu0
        %v2027 = vadd.f32 0.0, %v2026
        %v2028 = vpop.f32.mrb[0].mxu0
        %2029 = vmatprep.mubr.f32.mxu0 0.0
        %2030 = vmatmul.mubr.f32.gmra.mrb[0].mxu0 %v1850
        %v2031 = vpop.f32.mrb[0].mxu0
        %v2032 = vadd.f32 0.0, %v2031
        %v2033 = vpop.f32.mrb[0].mxu0
        %2034 = vmatprep.mubr.f32.mxu0 0.0
        %2035 = vmatmul.mubr.f32.gmra.mrb[0].mxu0 %v1853
        %v2036 = vpop.f32.mrb[0].mxu0
        %v2037 = vadd.f32 0.0, %v2036
        %v2038 = vpop.f32.mrb[0].mxu0
        %2039 = vmatprep.mubr.f32.mxu0 0.0
        %2040 = vmatmul.mubr.f32.gmra.mrb[0].mxu0 %v1856
        %v2041 = vpop.f32.mrb[0].mxu0
        %v2042 = vadd.f32 0.0, %v2041
        %v2043 = vpop.f32.mrb[0].mxu0
        %2044 = vmatprep.mubr.f32.mxu0 0.0
        %2045 = vmatmul.mubr.f32.gmra.mrb[0].mxu0 %v1859
        %v2046 = vpop.f32.mrb[0].mxu0
        %v2047 = vadd.f32 0.0, %v2046
        %v2048 = vpop.f32.mrb[0].mxu0
        %2049 = vmatprep.mubr.f32.mxu0 0.0
        %2050 = vmatmul.mubr.f32.gmra.mrb[0].mxu0 %v1862
        %v2051 = vpop.f32.mrb[0].mxu0
        %v2052 = vadd.f32 0.0, %v2051
        %v2053 = vpop.f32.mrb[0].mxu0
        %2054 = vmatprep.mubr.f32.mxu0 0.0
        %2055 = vmatmul.mubr.f32.gmra.mrb[0].mxu0 %v1865
        %v2056 = vpop.f32.mrb[0].mxu0
        %v2057 = vadd.f32 0.0, %v2056
        %v2058 = vpop.f32.mrb[0].mxu0
        %2059 = vmatprep.mubr.f32.mxu0 0.0
        %2060 = vmatmul.mubr.f32.gmra.mrb[0].mxu0 %v1868
        %v2061 = vpop.f32.mrb[0].mxu0
        %v2062 = vadd.f32 0.0, %v2061
        %v2063 = vpop.f32.mrb[0].mxu0
        %2064 = vmatprep.mubr.f32.mxu0 0.0
        %2065 = vmatmul.mubr.f32.gmra.mrb[0].mxu0 %v1871
        %v2066 = vpop.f32.mrb[0].mxu0
        %v2067 = vadd.f32 0.0, %v2066
        %v2068 = vpop.f32.mrb[0].mxu0
        %2069 = vmatprep.mubr.f32.mxu0 0.0
        %2070 = vmatmul.mubr.f32.gmra.mrb[0].mxu0 %v1874
        %v2071 = vpop.f32.mrb[0].mxu0
        %v2072 = vadd.f32 0.0, %v2071
        %v2073 = vpop.f32.mrb[0].mxu0
        %2074 = vmatprep.mubr.f32.mxu0 0.0
        %2075 = vmatmul.mubr.f32.gmra.mrb[0].mxu0 %v1877
        %v2076 = vpop.f32.mrb[0].mxu0
        %v2077 = vadd.f32 0.0, %v2076
        %v2078 = vpop.f32.mrb[0].mxu0
        %2079 = vmatprep.mubr.f32.mxu0 0.0
        %2080 = vmatmul.mubr.f32.gmra.mrb[0].mxu0 %v1880
        %v2081 = vpop.f32.mrb[0].mxu0
        %v2082 = vadd.f32 0.0, %v2081
        %v2083 = vpop.f32.mrb[0].mxu0
        %2084 = vmatprep.mubr.f32.mxu0 0.0
        %2085 = vmatmul.mubr.f32.gmra.mrb[0].mxu0 %v1883
        %v2086 = vpop.f32.mrb[0].mxu0
        %v2087 = vadd.f32 0.0, %v2086
        %v2088 = vpop.f32.mrb[0].mxu0
        %2089 = vmatprep.mubr.f32.mxu0 0.0
        %2090 = vmatmul.mubr.f32.gmra.mrb[0].mxu0 %v1886
        %v2091 = vpop.f32.mrb[0].mxu0
        %v2092 = vadd.f32 0.0, %v2091
        %v2093 = vpop.f32.mrb[0].mxu0
        %2094 = vmatprep.mubr.f32.mxu0 0.0
        %2095 = vmatmul.mubr.f32.gmra.mrb[0].mxu0 %v1889
        %v2096 = vpop.f32.mrb[0].mxu0
        %v2097 = vadd.f32 0.0, %v2096
        %v2098 = vpop.f32.mrb[0].mxu0
        %2099 = vmatprep.mubr.f32.mxu0 0.0
        %2100 = vmatmul.mubr.f32.gmra.mrb[0].mxu0 %v1892
        %v2101 = vpop.f32.mrb[0].mxu0
        %v2102 = vadd.f32 0.0, %v2101
        %v2103 = vpop.f32.mrb[0].mxu0
        %2104 = vmatprep.mubr.f32.mxu0 0.0
        %2105 = vmatmul.mubr.f32.gmra.mrb[0].mxu0 %v1895
        %v2106 = vpop.f32.mrb[0].mxu0
        %v2107 = vadd.f32 0.0, %v2106
        %v2108 = vpop.f32.mrb[0].mxu0
        %2109 = vmatprep.mubr.f32.mxu0 0.0
        %2110 = vmatmul.mubr.f32.gmra.mrb[0].mxu0 %v1898
        %v2111 = vpop.f32.mrb[0].mxu0
        %v2112 = vadd.f32 0.0, %v2111
        %v2113 = vpop.f32.mrb[0].mxu0
        %2114 = vmatprep.mubr.f32.mxu0 0.0
        %2115 = vmatmul.mubr.f32.gmra.mrb[0].mxu0 %v1901
        %v2116 = vpop.f32.mrb[0].mxu0
        %v2117 = vadd.f32 0.0, %v2116
        %v2118 = vpop.f32.mrb[0].mxu0
        %2119 = vmatprep.mubr.f32.mxu0 0.0
        %2120 = vmatmul.mubr.f32.gmra.mrb[0].mxu0 %v1904
        %v2121 = vpop.f32.mrb[0].mxu0
        %v2122 = vadd.f32 0.0, %v2121
        %v2123 = vpop.f32.mrb[0].mxu0
        %2124 = vmatprep.mubr.f32.mxu0 0.0
        %2125 = vmatmul.mubr.f32.gmra.mrb[0].mxu0 %v1907
        %v2126 = vpop.f32.mrb[0].mxu0
        %v2127 = vadd.f32 0.0, %v2126
        %v2128 = vpop.f32.mrb[0].mxu0
        %2129 = vmatprep.mubr.f32.mxu0 0.0
        %2130 = vmatmul.mubr.f32.gmra.mrb[0].mxu0 %v1910
        %v2131 = vpop.f32.mrb[0].mxu0
        %v2132 = vadd.f32 0.0, %v2131
        %v2133 = vpop.f32.mrb[0].mxu0
        %2134 = vmatprep.mubr.f32.mxu0 0.0
        %2135 = vmatmul.mubr.f32.gmra.mrb[0].mxu0 %v1913
        %v2136 = vpop.f32.mrb[0].mxu0
        %v2137 = vadd.f32 0.0, %v2136
        %v2138 = vpop.f32.mrb[0].mxu0
        %2139 = vdwg.mxu0
        %2140 = vxpose.xlu0.b32.start [1/16] %v1982, 128
        %2141 = vxpose.xlu0.b32.cont [2/16] %v1987, 128
        %2142 = vxpose.xlu0.b32.cont [3/16] %v1992, 128
        %2143 = vxpose.xlu0.b32.cont [4/16] %v1997, 128
        %2144 = vxpose.xlu0.b32.cont [5/16] %v2002, 128
        %2145 = vxpose.xlu0.b32.cont [6/16] %v2007, 128
        %2146 = vxpose.xlu0.b32.cont [7/16] %v2012, 128
        %2147 = vxpose.xlu0.b32.cont [8/16] %v2017, 128
        %2148 = vxpose.xlu0.b32.cont [9/16] %v2022, 128
        %2149 = vxpose.xlu0.b32.cont [10/16] %v2027, 128
        %2150 = vxpose.xlu0.b32.cont [11/16] %v2032, 128
        %2151 = vxpose.xlu0.b32.cont [12/16] %v2037, 128
        %2152 = vxpose.xlu0.b32.cont [13/16] %v2042, 128
        %2153 = vxpose.xlu0.b32.cont [14/16] %v2047, 128
        %2154 = vxpose.xlu0.b32.cont [15/16] %v2052, 128
        %2155 = vxpose.xlu0.b32.end [16/16] %v2057, 128
        %v2156 = vpop.trf.xlu0
        %v2157 = vpop.trf.xlu0
        %v2158 = vpop.trf.xlu0
        %v2159 = vpop.trf.xlu0
        %v2160 = vpop.trf.xlu0
        %v2161 = vpop.trf.xlu0
        %v2162 = vpop.trf.xlu0
        %v2163 = vpop.trf.xlu0
        %v2164 = vpop.trf.xlu0
        %v2165 = vpop.trf.xlu0
        %v2166 = vpop.trf.xlu0
        %v2167 = vpop.trf.xlu0
        %v2168 = vpop.trf.xlu0
        %v2169 = vpop.trf.xlu0
        %v2170 = vpop.trf.xlu0
        %v2171 = vpop.trf.xlu0
        %2172 = vxpose.xlu0.b32.start [1/16] %v2062, 128
        %2173 = vxpose.xlu0.b32.cont [2/16] %v2067, 128
        %2174 = vxpose.xlu0.b32.cont [3/16] %v2072, 128
        %2175 = vxpose.xlu0.b32.cont [4/16] %v2077, 128
        %2176 = vxpose.xlu0.b32.cont [5/16] %v2082, 128
        %2177 = vxpose.xlu0.b32.cont [6/16] %v2087, 128
        %2178 = vxpose.xlu0.b32.cont [7/16] %v2092, 128
        %2179 = vxpose.xlu0.b32.cont [8/16] %v2097, 128
        %2180 = vxpose.xlu0.b32.cont [9/16] %v2102, 128
        %2181 = vxpose.xlu0.b32.cont [10/16] %v2107, 128
        %2182 = vxpose.xlu0.b32.cont [11/16] %v2112, 128
        %2183 = vxpose.xlu0.b32.cont [12/16] %v2117, 128
        %2184 = vxpose.xlu0.b32.cont [13/16] %v2122, 128
        %2185 = vxpose.xlu0.b32.cont [14/16] %v2127, 128
        %2186 = vxpose.xlu0.b32.cont [15/16] %v2132, 128
        %2187 = vxpose.xlu0.b32.end [16/16] %v2137, 128
        %v2188 = vpop.trf.xlu0
        %v2189 = vpop.trf.xlu0
        %v2190 = vpop.trf.xlu0
        %v2191 = vpop.trf.xlu0
        %v2192 = vpop.trf.xlu0
        %v2193 = vpop.trf.xlu0
        %v2194 = vpop.trf.xlu0
        %v2195 = vpop.trf.xlu0
        %v2196 = vpop.trf.xlu0
        %v2197 = vpop.trf.xlu0
        %v2198 = vpop.trf.xlu0
        %v2199 = vpop.trf.xlu0
        %v2200 = vpop.trf.xlu0
        %v2201 = vpop.trf.xlu0
        %v2202 = vpop.trf.xlu0
        %v2203 = vpop.trf.xlu0
        %v2204 = vld [vmem:[%s3] sm:$0xff]
        %v2205 = vld [vmem:[%s3 + $0x8] sm:$0xff]
        %2207 = vset.pattern.permute.xlu0 0
        %2208 = vperm.xlu0 %2207, %v2204
        %v2209 = vpop.permute.xlu0 %2208
        %2212 = vset.pattern.permute.xlu0 0
        %2213 = vperm.xlu0 %2212, %v2205
        %v2214 = vpop.permute.xlu0 %2213
        %v2216 = vadd.f32 %v2156, %v2209
        %v2217 = vadd.f32 %v2188, %v2209
        %v2218 = vadd.f32 %v2157, %v2214
        %v2219 = vadd.f32 %v2189, %v2214
        %2220 = vst [vmem:[%s217] sm:$0xff] %v2216
        %2221 = vst [vmem:[%s217 + $0x8] sm:$0xff] %v2217
        %2222 = vst [vmem:[%s217 + $0x10] sm:$0xff] %v2218
        %2223 = vst [vmem:[%s217 + $0x18] sm:$0xff] %v2219
        %s2224 = sand.u32 %s137, 1
        %s2225 = scalar_lea.sflag [#allocation3], %s2224
        %s2226 = sand.u32 %s137, 1
        %s2227 = smul.addr %s2226, 32
        %s2228 = scalar_lea.vmem [#allocation2], %s2227
        // Predicated region
        $region41: #{tpu_custom_call.1} parent=39 // pred_check
          %p2229 = pneg %p147
        $region42: #{tpu_custom_call.1} parent=39 // pred_check_branch
          %2231 = sbr.rel (%p2229) target = $region44
        $region43: #{tpu_custom_call.1} parent=39 // pred_region
          %s2233 = ssub.s32 512, 512
          %2234 = vsyncadd %s2225, %s2233
          %s2235 = smul.addr %s19, 4
          %s2236 = smul.addr %s2235, 128
          %s2237 = scalar_lea.hbm %s5, %s2236
          %s2238 = sshll.u32 %s2228, 4
          %s2239 = int_to_ptr.vmem [resolvable:$true] %s2238
          %2244 = dma.vmem_to_hbm [thread:$0]  %s2239, 512, %s2237, %s2225, 256, 256, 16
        $region44: #{tpu_custom_call.1} parent=39 // pred_fallthru
          _
      $region40: #{tpu_custom_call.1} parent=5 // pred_fallthru
        _
      %p2245 = scmp.le.s32.totalorder 2, %s14
      // Predicated region
      $region45: #{tpu_custom_call.1} parent=5 // pred_check
        %p2246 = pneg %p2245
      $region46: #{tpu_custom_call.1} parent=5 // pred_check_branch
        %2248 = sbr.rel (%p2246) target = $region48
      $region47: #{tpu_custom_call.1} parent=5 // pred_region
        %s2249 = ssub.s32 %s14, 2
        // Predicated region
        $region49: #{tpu_custom_call.1} parent=47 // pred_check
          %p2250 = pneg %p153
        $region50: #{tpu_custom_call.1} parent=47 // pred_check_branch
          %2252 = sbr.rel (%p2250) target = $region52
        $region51: #{tpu_custom_call.1} parent=47 // pred_region
          %s2253 = sand.u32 %s138, 1
          %s2254 = scalar_lea.sflag [#allocation3], %s2253
          %s2255 = sand.u32 %s138, 1
          %s2256 = smul.addr %s2255, 32
          %s2257 = scalar_lea.vmem [#allocation2], %s2256
          %2258 = dma.done %s2254, 512
        $region52: #{tpu_custom_call.1} parent=47 // pred_fallthru
          _
      $region48: #{tpu_custom_call.1} parent=5 // pred_fallthru
        _
    $region6: #{tpu_custom_call.1} parent=1 // loop_footer
      %s18 = sadd.s32 1, %s14
    $region7: #{tpu_custom_call.1} parent=1 // loop_footer_branch
      %13 = sbr.rel target = $region3
    $region8: #{tpu_custom_call.1} parent=1 // loop_exit
      _
    %2259 = vsyncpa [#allocation3], 1
    %s2260 = scalar_lea.sflag [#allocation3], 1
    %2261 = vsyncpa %s2260, 1

</llo_original>
